<compile_context>
chip_gen: v7x
topology: tpu7x:2x2x1
jax: 0.10.0
libtpu: 0.0.40
codegen_flags: <defaults>
</compile_context>

<pallas_src>
import jax
import jax.numpy as jnp
from jax.experimental import pallas as pl
from jax.experimental.pallas import tpu as pltpu

INPUT_SIZE = 1536
H1 = 128
H2 = 64
H2_PAD = 128          # zero-padded hidden-2 width (full vreg lanes)
OUTPUT_SIZE = 30
OUT_PAD = 128         # zero-padded output width (lane-dense stores)


def _mlp_kernel(x_ref, w1_ref, b1_ref, w2_ref, b2_ref, w3_ref, b3_ref, o_ref):
    # All three matmuls + ReLUs fused (MXU + VPU), f32 accumulation.
    x = x_ref[...]
    h1 = jnp.dot(x, w1_ref[...], preferred_element_type=jnp.float32) + b1_ref[...]
    h1 = jnp.maximum(h1, 0.0)
    h2 = jnp.dot(h1, w2_ref[...], preferred_element_type=jnp.float32) + b2_ref[...]
    h2 = jnp.maximum(h2, 0.0)
    out = jnp.dot(h2, w3_ref[...], preferred_element_type=jnp.float32) + b3_ref[...]
    o_ref[...] = out.astype(o_ref.dtype)


def _pad_params(params):
    """Zero-pad H2 (64->128) and the output dim (30->128); exact zeros, so the
    visible result is unchanged after slicing."""
    w1, b1 = params["w1"], params["b1"]
    w2 = jnp.pad(params["w2"], ((0, 0), (0, H2_PAD - H2)))
    b2 = jnp.pad(params["b2"], ((0, 0), (0, H2_PAD - H2)))
    w3 = jnp.pad(params["w3"], ((0, H2_PAD - H2), (0, OUT_PAD - OUTPUT_SIZE)))
    b3 = jnp.pad(params["b3"], ((0, 0), (0, OUT_PAD - OUTPUT_SIZE)))
    return w1, b1, w2, b2, w3, b3


def nn_clf_gpt_forward(x, params, *, batch_tile=512):
    """x: [B, INPUT_SIZE] float32. params: dict of w1,b1,w2,b2,w3,b3
    (weights stored [fan_in, fan_out], i.e. transpose of PyTorch layout)."""
    B, F = x.shape
    assert F == INPUT_SIZE

    # --- batch padding / tile selection -----------------------------------
    B_pad = -(-B // 8) * 8                      # sublane-align the batch
    tile = max(8, (min(batch_tile, B_pad) // 8) * 8)
    # Prefer >= 2 grid steps (v7x has 2 TensorCores on the parallel axis).
    if B_pad // tile < 2 and B_pad >= 16:
        tile = max(8, ((B_pad // 2) // 8) * 8)
    B_pad = -(-B_pad // tile) * tile
    if B_pad != B:
        x = jnp.pad(x, ((0, B_pad - B), (0, 0)))
    grid = (B_pad // tile,)

    w1, b1, w2, b2, w3, b3 = _pad_params(params)

    # Advisory cost estimate (padded shapes).
    flops = 2 * B_pad * (INPUT_SIZE * H1 + H1 * H2_PAD + H2_PAD * OUT_PAD)
    bytes_accessed = 4 * (
        B_pad * INPUT_SIZE + B_pad * OUT_PAD
        + INPUT_SIZE * H1 + H1 * H2_PAD + H2_PAD * OUT_PAD
        + H1 + H2_PAD + OUT_PAD)

    def _run(single_buffer_weights):
        if single_buffer_weights:
            # Constant index_map -> weights are resident; one buffer suffices
            # and frees ~1 MiB of VMEM for bigger batch tiles.
            resident = lambda shape: pl.BlockSpec(
                shape, lambda i: (0, 0), pipeline_mode=pl.Buffered(1))
        else:
            resident = lambda shape: pl.BlockSpec(shape, lambda i: (0, 0))

        return pl.pallas_call(
            _mlp_kernel,
            out_shape=jax.ShapeDtypeStruct((B_pad, OUT_PAD), jnp.float32),
            grid=grid,
            in_specs=[
                pl.BlockSpec((tile, INPUT_SIZE), lambda i: (i, 0)),  # x tile
                resident((INPUT_SIZE, H1)),
                resident((1, H1)),
                resident((H1, H2_PAD)),
                resident((1, H2_PAD)),
                resident((H2_PAD, OUT_PAD)),
                resident((1, OUT_PAD)),
            ],
            out_specs=pl.BlockSpec((tile, OUT_PAD), lambda i: (i, 0)),
            compiler_params=pltpu.CompilerParams(
                dimension_semantics=("parallel",),
                vmem_limit_bytes=64 * 1024 * 1024),
            cost_estimate=pl.CostEstimate(
                flops=flops, transcendentals=0, bytes_accessed=bytes_accessed),
        )(x, w1, b1, w2, b2, w3, b3)

    try:
        out = _run(True)
    except Exception:
        # Older jax without pipeline_mode support on pallas_call BlockSpecs:
        # fall back to default (double-buffered) weight specs.
        out = _run(False)

    # Strip batch / lane padding.
    return out[:B, :OUTPUT_SIZE]


def init_params(key):
    """Deterministic synthetic parameters (PyTorch-Linear-like uniform init),
    weights stored as [fan_in, fan_out]."""
    ks = jax.random.split(key, 6)

    def linear(kw, kb, fan_in, fan_out):
        bound = 1.0 / jnp.sqrt(fan_in)
        w = jax.random.uniform(kw, (fan_in, fan_out), jnp.float32, -bound, bound)
        b = jax.random.uniform(kb, (1, fan_out), jnp.float32, -bound, bound)
        return w, b

    w1, b1 = linear(ks[0], ks[1], INPUT_SIZE, H1)
    w2, b2 = linear(ks[2], ks[3], H1, H2)
    w3, b3 = linear(ks[4], ks[5], H2, OUTPUT_SIZE)
    return {"w1": w1, "b1": b1, "w2": w2, "b2": b2, "w3": w3, "b3": b3}


def reference_forward(x, p):
    h1 = jnp.maximum(x @ p["w1"] + p["b1"], 0.0)
    h2 = jnp.maximum(h1 @ p["w2"] + p["b2"], 0.0)
    return h2 @ p["w3"] + p["b3"]


if __name__ == "__main__":
    key = jax.random.PRNGKey(0)
    k_x, k_p = jax.random.split(key)

    # Small example batch (feature size 1536 is fixed by the module).
    # B=4 also exercises the batch-padding path (4 -> 8 rows).
    B = 4
    x = jax.random.normal(k_x, (B, INPUT_SIZE), jnp.float32)
    params = init_params(k_p)

    out = nn_clf_gpt_forward(x, params)
    out = jax.block_until_ready(out)

    ref = reference_forward(x, params)
    assert out.shape == (B, OUTPUT_SIZE)
    assert jnp.allclose(out, ref, atol=1e-4, rtol=1e-4), "mismatch vs reference"

    print("KERNEL_OK")
</pallas_src>

<mosaic_0001>
module attributes {stable_mosaic.version = 11 : i64} {
  func.func @_mlp_kernel(%arg0: i32, %arg1: memref<8x1536xf32, #tpu.memory_space<vmem>>, %arg2: memref<1536x128xf32, #tpu.memory_space<vmem>>, %arg3: memref<1x128xf32, #tpu.memory_space<vmem>>, %arg4: memref<128x128xf32, #tpu.memory_space<vmem>>, %arg5: memref<1x128xf32, #tpu.memory_space<vmem>>, %arg6: memref<128x128xf32, #tpu.memory_space<vmem>>, %arg7: memref<1x128xf32, #tpu.memory_space<vmem>>, %arg8: memref<8x128xf32, #tpu.memory_space<vmem>>) attributes {dimension_semantics = [#tpu.dimension_semantics<parallel>], iteration_bounds = array<i64: 1>, scalar_prefetch = 0 : i64, scratch_operands = 0 : i64, tpu.core_type = #tpu.core_type<tc>, window_params = [{transform_indices = @transform_0, window_bounds = array<i64: 8, 1536>}, {pipeline_mode = #tpu.pipeline_mode<synchronous>, transform_indices = @transform_1, window_bounds = array<i64: 1536, 128>}, {pipeline_mode = #tpu.pipeline_mode<synchronous>, transform_indices = @transform_2, window_bounds = array<i64: 1, 128>}, {pipeline_mode = #tpu.pipeline_mode<synchronous>, transform_indices = @transform_3, window_bounds = array<i64: 128, 128>}, {pipeline_mode = #tpu.pipeline_mode<synchronous>, transform_indices = @transform_4, window_bounds = array<i64: 1, 128>}, {pipeline_mode = #tpu.pipeline_mode<synchronous>, transform_indices = @transform_5, window_bounds = array<i64: 128, 128>}, {pipeline_mode = #tpu.pipeline_mode<synchronous>, transform_indices = @transform_6, window_bounds = array<i64: 1, 128>}, {transform_indices = @transform_7, window_bounds = array<i64: 8, 128>}]} {
    %c0 = arith.constant 0 : index
    %c0_0 = arith.constant 0 : index
    %0 = vector.load %arg1[%c0, %c0_0] : memref<8x1536xf32, #tpu.memory_space<vmem>>, vector<8x1536xf32>
    %c0_1 = arith.constant 0 : index
    %c0_2 = arith.constant 0 : index
    %1 = vector.load %arg2[%c0_1, %c0_2] : memref<1536x128xf32, #tpu.memory_space<vmem>>, vector<1536x128xf32>
    %cst = arith.constant dense<0.000000e+00> : vector<8x128xf32>
    %2 = tpu.matmul %0, %1, %cst {dimension_numbers = #tpu.dot_dimension_numbers<[1], [0], [0], [1], [0, 0, 1, 1], [], []>} : vector<8x1536xf32>, vector<1536x128xf32>, vector<8x128xf32> -> vector<8x128xf32>
    %c0_3 = arith.constant 0 : index
    %c0_4 = arith.constant 0 : index
    %3 = vector.load %arg3[%c0_3, %c0_4] : memref<1x128xf32, #tpu.memory_space<vmem>>, vector<1x128xf32>
    %4 = vector.broadcast %3 : vector<1x128xf32> to vector<8x128xf32>
    %5 = arith.addf %2, %4 : vector<8x128xf32>
    %cst_5 = arith.constant 0.000000e+00 : f32
    %6 = vector.broadcast %cst_5 : f32 to vector<8x128xf32>
    %7 = arith.maximumf %5, %6 : vector<8x128xf32>
    %c0_6 = arith.constant 0 : index
    %c0_7 = arith.constant 0 : index
    %8 = vector.load %arg4[%c0_6, %c0_7] : memref<128x128xf32, #tpu.memory_space<vmem>>, vector<128x128xf32>
    %cst_8 = arith.constant dense<0.000000e+00> : vector<8x128xf32>
    %9 = tpu.matmul %7, %8, %cst_8 {dimension_numbers = #tpu.dot_dimension_numbers<[1], [0], [0], [1], [0, 0, 1, 1], [], []>} : vector<8x128xf32>, vector<128x128xf32>, vector<8x128xf32> -> vector<8x128xf32>
    %c0_9 = arith.constant 0 : index
    %c0_10 = arith.constant 0 : index
    %10 = vector.load %arg5[%c0_9, %c0_10] : memref<1x128xf32, #tpu.memory_space<vmem>>, vector<1x128xf32>
    %11 = vector.broadcast %10 : vector<1x128xf32> to vector<8x128xf32>
    %12 = arith.addf %9, %11 : vector<8x128xf32>
    %cst_11 = arith.constant 0.000000e+00 : f32
    %13 = vector.broadcast %cst_11 : f32 to vector<8x128xf32>
    %14 = arith.maximumf %12, %13 : vector<8x128xf32>
    %c0_12 = arith.constant 0 : index
    %c0_13 = arith.constant 0 : index
    %15 = vector.load %arg6[%c0_12, %c0_13] : memref<128x128xf32, #tpu.memory_space<vmem>>, vector<128x128xf32>
    %cst_14 = arith.constant dense<0.000000e+00> : vector<8x128xf32>
    %16 = tpu.matmul %14, %15, %cst_14 {dimension_numbers = #tpu.dot_dimension_numbers<[1], [0], [0], [1], [0, 0, 1, 1], [], []>} : vector<8x128xf32>, vector<128x128xf32>, vector<8x128xf32> -> vector<8x128xf32>
    %c0_15 = arith.constant 0 : index
    %c0_16 = arith.constant 0 : index
    %17 = vector.load %arg7[%c0_15, %c0_16] : memref<1x128xf32, #tpu.memory_space<vmem>>, vector<1x128xf32>
    %18 = vector.broadcast %17 : vector<1x128xf32> to vector<8x128xf32>
    %19 = arith.addf %16, %18 : vector<8x128xf32>
    %c0_17 = arith.constant 0 : index
    %c0_18 = arith.constant 0 : index
    %20 = vector.load %arg8[%c0_17, %c0_18] : memref<8x128xf32, #tpu.memory_space<vmem>>, vector<8x128xf32>
    tpu.vector_store %arg8[%c0_17, %c0_18], %19 {strides = array<i32>} : memref<8x128xf32, #tpu.memory_space<vmem>>, vector<8x128xf32>,
    return
  }
  func.func @transform_0(%arg0: i32) -> (i32, i32) {
    %c0_i32 = arith.constant 0 : i32
    %c0_i32_0 = arith.constant 0 : i32
    return %arg0, %c0_i32 : i32, i32
  }
  func.func @transform_1(%arg0: i32) -> (i32, i32) {
    %c0_i32 = arith.constant 0 : i32
    %c0_i32_0 = arith.constant 0 : i32
    %c0_i32_1 = arith.constant 0 : i32
    return %c0_i32, %c0_i32_0 : i32, i32
  }
  func.func @transform_2(%arg0: i32) -> (i32, i32) {
    %c0_i32 = arith.constant 0 : i32
    %c0_i32_0 = arith.constant 0 : i32
    %c0_i32_1 = arith.constant 0 : i32
    return %c0_i32, %c0_i32_0 : i32, i32
  }
  func.func @transform_3(%arg0: i32) -> (i32, i32) {
    %c0_i32 = arith.constant 0 : i32
    %c0_i32_0 = arith.constant 0 : i32
    %c0_i32_1 = arith.constant 0 : i32
    return %c0_i32, %c0_i32_0 : i32, i32
  }
  func.func @transform_4(%arg0: i32) -> (i32, i32) {
    %c0_i32 = arith.constant 0 : i32
    %c0_i32_0 = arith.constant 0 : i32
    %c0_i32_1 = arith.constant 0 : i32
    return %c0_i32, %c0_i32_0 : i32, i32
  }
  func.func @transform_5(%arg0: i32) -> (i32, i32) {
    %c0_i32 = arith.constant 0 : i32
    %c0_i32_0 = arith.constant 0 : i32
    %c0_i32_1 = arith.constant 0 : i32
    return %c0_i32, %c0_i32_0 : i32, i32
  }
  func.func @transform_6(%arg0: i32) -> (i32, i32) {
    %c0_i32 = arith.constant 0 : i32
    %c0_i32_0 = arith.constant 0 : i32
    %c0_i32_1 = arith.constant 0 : i32
    return %c0_i32, %c0_i32_0 : i32, i32
  }
  func.func @transform_7(%arg0: i32) -> (i32, i32) {
    %c0_i32 = arith.constant 0 : i32
    %c0_i32_0 = arith.constant 0 : i32
    return %arg0, %c0_i32 : i32, i32
  }
}

module attributes {stable_mosaic.version = 11 : i64} {
  func.func @_mlp_kernel(%arg0: i32, %arg1: memref<8x1536xf32, #tpu.memory_space<vmem>>, %arg2: memref<1536x128xf32, #tpu.memory_space<vmem>>, %arg3: memref<1x128xf32, #tpu.memory_space<vmem>>, %arg4: memref<128x128xf32, #tpu.memory_space<vmem>>, %arg5: memref<1x128xf32, #tpu.memory_space<vmem>>, %arg6: memref<128x128xf32, #tpu.memory_space<vmem>>, %arg7: memref<1x128xf32, #tpu.memory_space<vmem>>, %arg8: memref<8x128xf32, #tpu.memory_space<vmem>>) attributes {dimension_semantics = [#tpu.dimension_semantics<parallel>], iteration_bounds = array<i64: 1>, scalar_prefetch = 0 : i64, scratch_operands = 0 : i64, tpu.core_type = #tpu.core_type<tc>, window_params = [{transform_indices = @transform_0, window_bounds = array<i64: 8, 1536>}, {pipeline_mode = #tpu.pipeline_mode<synchronous>, transform_indices = @transform_1, window_bounds = array<i64: 1536, 128>}, {pipeline_mode = #tpu.pipeline_mode<synchronous>, transform_indices = @transform_2, window_bounds = array<i64: 1, 128>}, {pipeline_mode = #tpu.pipeline_mode<synchronous>, transform_indices = @transform_3, window_bounds = array<i64: 128, 128>}, {pipeline_mode = #tpu.pipeline_mode<synchronous>, transform_indices = @transform_4, window_bounds = array<i64: 1, 128>}, {pipeline_mode = #tpu.pipeline_mode<synchronous>, transform_indices = @transform_5, window_bounds = array<i64: 128, 128>}, {pipeline_mode = #tpu.pipeline_mode<synchronous>, transform_indices = @transform_6, window_bounds = array<i64: 1, 128>}, {transform_indices = @transform_7, window_bounds = array<i64: 8, 128>}]} {
    %c0 = arith.constant 0 : index
    %c0_0 = arith.constant 0 : index
    %0 = vector.load %arg1[%c0, %c0_0] : memref<8x1536xf32, #tpu.memory_space<vmem>>, vector<8x1536xf32>
    %c0_1 = arith.constant 0 : index
    %c0_2 = arith.constant 0 : index
    %1 = vector.load %arg2[%c0_1, %c0_2] : memref<1536x128xf32, #tpu.memory_space<vmem>>, vector<1536x128xf32>
    %cst = arith.constant dense<0.000000e+00> : vector<8x128xf32>
    %2 = tpu.matmul %0, %1, %cst {dimension_numbers = #tpu.dot_dimension_numbers<[1], [0], [0], [1], [0, 0, 1, 1], [], []>} : vector<8x1536xf32>, vector<1536x128xf32>, vector<8x128xf32> -> vector<8x128xf32>
    %c0_3 = arith.constant 0 : index
    %c0_4 = arith.constant 0 : index
    %3 = vector.load %arg3[%c0_3, %c0_4] : memref<1x128xf32, #tpu.memory_space<vmem>>, vector<1x128xf32>
    %4 = vector.broadcast %3 : vector<1x128xf32> to vector<8x128xf32>
    %5 = arith.addf %2, %4 : vector<8x128xf32>
    %cst_5 = arith.constant 0.000000e+00 : f32
    %6 = vector.broadcast %cst_5 : f32 to vector<8x128xf32>
    %7 = arith.maximumf %5, %6 : vector<8x128xf32>
    %c0_6 = arith.constant 0 : index
    %c0_7 = arith.constant 0 : index
    %8 = vector.load %arg4[%c0_6, %c0_7] : memref<128x128xf32, #tpu.memory_space<vmem>>, vector<128x128xf32>
    %cst_8 = arith.constant dense<0.000000e+00> : vector<8x128xf32>
    %9 = tpu.matmul %7, %8, %cst_8 {dimension_numbers = #tpu.dot_dimension_numbers<[1], [0], [0], [1], [0, 0, 1, 1], [], []>} : vector<8x128xf32>, vector<128x128xf32>, vector<8x128xf32> -> vector<8x128xf32>
    %c0_9 = arith.constant 0 : index
    %c0_10 = arith.constant 0 : index
    %10 = vector.load %arg5[%c0_9, %c0_10] : memref<1x128xf32, #tpu.memory_space<vmem>>, vector<1x128xf32>
    %11 = vector.broadcast %10 : vector<1x128xf32> to vector<8x128xf32>
    %12 = arith.addf %9, %11 : vector<8x128xf32>
    %cst_11 = arith.constant 0.000000e+00 : f32
    %13 = vector.broadcast %cst_11 : f32 to vector<8x128xf32>
    %14 = arith.maximumf %12, %13 : vector<8x128xf32>
    %c0_12 = arith.constant 0 : index
    %c0_13 = arith.constant 0 : index
    %15 = vector.load %arg6[%c0_12, %c0_13] : memref<128x128xf32, #tpu.memory_space<vmem>>, vector<128x128xf32>
    %cst_14 = arith.constant dense<0.000000e+00> : vector<8x128xf32>
    %16 = tpu.matmul %14, %15, %cst_14 {dimension_numbers = #tpu.dot_dimension_numbers<[1], [0], [0], [1], [0, 0, 1, 1], [], []>} : vector<8x128xf32>, vector<128x128xf32>, vector<8x128xf32> -> vector<8x128xf32>
    %c0_15 = arith.constant 0 : index
    %c0_16 = arith.constant 0 : index
    %17 = vector.load %arg7[%c0_15, %c0_16] : memref<1x128xf32, #tpu.memory_space<vmem>>, vector<1x128xf32>
    %18 = vector.broadcast %17 : vector<1x128xf32> to vector<8x128xf32>
    %19 = arith.addf %16, %18 : vector<8x128xf32>
    %c0_17 = arith.constant 0 : index
    %c0_18 = arith.constant 0 : index
    %20 = vector.load %arg8[%c0_17, %c0_18] : memref<8x128xf32, #tpu.memory_space<vmem>>, vector<8x128xf32>
    tpu.vector_store %arg8[%c0_17, %c0_18], %19 {strides = array<i32>} : memref<8x128xf32, #tpu.memory_space<vmem>>, vector<8x128xf32>,
    return
  }
  func.func @transform_0(%arg0: i32) -> (i32, i32) {
    %c0_i32 = arith.constant 0 : i32
    %c0_i32_0 = arith.constant 0 : i32
    return %arg0, %c0_i32 : i32, i32
  }
  func.func @transform_1(%arg0: i32) -> (i32, i32) {
    %c0_i32 = arith.constant 0 : i32
    %c0_i32_0 = arith.constant 0 : i32
    %c0_i32_1 = arith.constant 0 : i32
    return %c0_i32, %c0_i32_0 : i32, i32
  }
  func.func @transform_2(%arg0: i32) -> (i32, i32) {
    %c0_i32 = arith.constant 0 : i32
    %c0_i32_0 = arith.constant 0 : i32
    %c0_i32_1 = arith.constant 0 : i32
    return %c0_i32, %c0_i32_0 : i32, i32
  }
  func.func @transform_3(%arg0: i32) -> (i32, i32) {
    %c0_i32 = arith.constant 0 : i32
    %c0_i32_0 = arith.constant 0 : i32
    %c0_i32_1 = arith.constant 0 : i32
    return %c0_i32, %c0_i32_0 : i32, i32
  }
  func.func @transform_4(%arg0: i32) -> (i32, i32) {
    %c0_i32 = arith.constant 0 : i32
    %c0_i32_0 = arith.constant 0 : i32
    %c0_i32_1 = arith.constant 0 : i32
    return %c0_i32, %c0_i32_0 : i32, i32
  }
  func.func @transform_5(%arg0: i32) -> (i32, i32) {
    %c0_i32 = arith.constant 0 : i32
    %c0_i32_0 = arith.constant 0 : i32
    %c0_i32_1 = arith.constant 0 : i32
    return %c0_i32, %c0_i32_0 : i32, i32
  }
  func.func @transform_6(%arg0: i32) -> (i32, i32) {
    %c0_i32 = arith.constant 0 : i32
    %c0_i32_0 = arith.constant 0 : i32
    %c0_i32_1 = arith.constant 0 : i32
    return %c0_i32, %c0_i32_0 : i32, i32
  }
  func.func @transform_7(%arg0: i32) -> (i32, i32) {
    %c0_i32 = arith.constant 0 : i32
    %c0_i32_0 = arith.constant 0 : i32
    return %arg0, %c0_i32 : i32, i32
  }
}

</mosaic_0001>

<llo_original>
// kernel: tpu_custom_call.1
$region0: #{tpu_custom_call.1}
  #allocation0 [shape = 'u32[]', space=smem, size = 0x4, offset = 0x4, fixed_abs, tag = 'smem constant byte address 0x4 - core index']
  #allocation1 [shape = 'u32[144,128]{1,0:T(1,128)}', space=vmem, size = 0x12000, scoped, tag = 'internal scratch']
  %s0 = inlined_call_operand.hbm [shape: f32[8,1536], index: 0, kind: input, shape index: {}]
  %s1 = inlined_call_operand.hbm [shape: f32[1536,128], index: 1, kind: input, shape index: {}]
  %s2 = inlined_call_operand.hbm [shape: f32[1,128], index: 2, kind: input, shape index: {}]
  %s3 = inlined_call_operand.hbm [shape: f32[128,128], index: 3, kind: input, shape index: {}]
  %s4 = inlined_call_operand.hbm [shape: f32[1,128], index: 4, kind: input, shape index: {}]
  %s5 = inlined_call_operand.hbm [shape: f32[128,128], index: 5, kind: input, shape index: {}]
  %s6 = inlined_call_operand.hbm [shape: f32[1,128], index: 6, kind: input, shape index: {}]
  %s7 = inlined_call_operand.hbm [shape: f32[8,128], index: 7, kind: output, shape index: {}]
  %s8 = sld [smem:[#allocation0]]
  $region66: #{tpu_custom_call.1} parent=0
    _
  %s10 = ssub.s32 1, %s8
  %s11 = scalar_select 0, %s10, %s8
  $region1: #{tpu_custom_call.1} parent=0
    #allocation2 [shape = 'u8[49152]{0}', space=vmem, size = 0xc000, scoped, tag = 'input window, operand 0, single buffered']
    #allocation3 [shape = 's32[1]{0}', space=sflag, size = 0x4, scoped, tag = 'scoped memory for tpu_custom_call.1']
    #allocation4 [shape = 's32[1]{0}', space=sflag, size = 0x4, scoped, tag = 'scoped memory for tpu_custom_call.1']
    #allocation5 [shape = 'u8[786432]{0}', space=vmem, size = 0xc0000, scoped, tag = 'input window, operand 1, single buffered']
    #allocation6 [shape = 's32[1]{0}', space=sflag, size = 0x4, scoped, tag = 'scoped memory for tpu_custom_call.1']
    #allocation7 [shape = 'u8[512]{0}', space=vmem, size = 0x400, scoped, tag = 'input window, operand 2, single buffered']
    #allocation8 [shape = 'u8[65536]{0}', space=vmem, size = 0x10000, scoped, tag = 'input window, operand 3, single buffered']
    #allocation9 [shape = 's32[1]{0}', space=sflag, size = 0x4, scoped, tag = 'scoped memory for tpu_custom_call.1']
    #allocation10 [shape = 'u8[512]{0}', space=vmem, size = 0x400, scoped, tag = 'input window, operand 4, single buffered']
    #allocation11 [shape = 'u8[65536]{0}', space=vmem, size = 0x10000, scoped, tag = 'input window, operand 5, single buffered']
    #allocation12 [shape = 's32[1]{0}', space=sflag, size = 0x4, scoped, tag = 'scoped memory for tpu_custom_call.1']
    #allocation13 [shape = 'u8[512]{0}', space=vmem, size = 0x400, scoped, tag = 'input window, operand 6, single buffered']
    #allocation14 [shape = 'u8[4096]{0}', space=vmem, size = 0x1000, scoped, tag = 'output window, operand 0, single buffered']
    %12 = vsyncpa [#allocation3], 0
    %13 = vsyncpa [#allocation6], 0
    %14 = vsyncpa [#allocation9], 0
    %15 = vsyncpa [#allocation12], 0
    %16 = vsyncpa [#allocation4], 0
    // Predicated region
    $region2: #{tpu_custom_call.1} parent=1 // pred_check
      _
    $region3: #{tpu_custom_call.1} parent=1 // pred_check_branch
      %18 = sbr.rel (0) target = $region5
    $region4: #{tpu_custom_call.1} parent=1 // pred_region
      %s20 = ssub.s32 1536, 1536
      %21 = vsyncadd [#allocation3], %s20
      %s23 = sshll.u32 [#allocation2], 4
      %s24 = int_to_ptr.vmem [resolvable:$true] %s23
      %26 = dma.hbm_to_vmem [thread:$0]  %s0, 1536, %s24, [#allocation3]
    $region5: #{tpu_custom_call.1} parent=1 // pred_fallthru
      _
    // Predicated region
    $region6: #{tpu_custom_call.1} parent=1 // pred_check
      _
    $region7: #{tpu_custom_call.1} parent=1 // pred_check_branch
      %28 = sbr.rel (0) target = $region9
    $region8: #{tpu_custom_call.1} parent=1 // pred_region
      %s30 = ssub.s32 24576, 24576
      %31 = vsyncadd [#allocation6], %s30
      %s32 = sshll.u32 [#allocation5], 4
      %s33 = int_to_ptr.vmem [resolvable:$true] %s32
      %38 = dma.hbm_to_vmem [thread:$0]  %s1, 24576, %s33, [#allocation6], 128, 128, 8
    $region9: #{tpu_custom_call.1} parent=1 // pred_fallthru
      _
    // Predicated region
    $region10: #{tpu_custom_call.1} parent=1 // pred_check
      _
    $region11: #{tpu_custom_call.1} parent=1 // pred_check_branch
      %40 = sbr.rel (0) target = $region13
    $region12: #{tpu_custom_call.1} parent=1 // pred_region
      %s42 = ssub.s32 16, 16
      %43 = vsyncadd [#allocation6], %s42
      %s45 = sshll.u32 [#allocation7], 4
      %s46 = int_to_ptr.vmem [resolvable:$true] %s45
      %48 = dma.hbm_to_vmem [thread:$0]  %s2, 16, %s46, [#allocation6]
    $region13: #{tpu_custom_call.1} parent=1 // pred_fallthru
      _
    // Predicated region
    $region14: #{tpu_custom_call.1} parent=1 // pred_check
      _
    $region15: #{tpu_custom_call.1} parent=1 // pred_check_branch
      %50 = sbr.rel (0) target = $region17
    $region16: #{tpu_custom_call.1} parent=1 // pred_region
      %s52 = ssub.s32 2048, 2048
      %53 = vsyncadd [#allocation9], %s52
      %s54 = sshll.u32 [#allocation8], 4
      %s55 = int_to_ptr.vmem [resolvable:$true] %s54
      %60 = dma.hbm_to_vmem [thread:$0]  %s3, 2048, %s55, [#allocation9], 128, 128, 8
    $region17: #{tpu_custom_call.1} parent=1 // pred_fallthru
      _
    // Predicated region
    $region18: #{tpu_custom_call.1} parent=1 // pred_check
      _
    $region19: #{tpu_custom_call.1} parent=1 // pred_check_branch
      %62 = sbr.rel (0) target = $region21
    $region20: #{tpu_custom_call.1} parent=1 // pred_region
      %s64 = ssub.s32 16, 16
      %65 = vsyncadd [#allocation9], %s64
      %s67 = sshll.u32 [#allocation10], 4
      %s68 = int_to_ptr.vmem [resolvable:$true] %s67
      %70 = dma.hbm_to_vmem [thread:$0]  %s4, 16, %s68, [#allocation9]
    $region21: #{tpu_custom_call.1} parent=1 // pred_fallthru
      _
    // Predicated region
    $region22: #{tpu_custom_call.1} parent=1 // pred_check
      _
    $region23: #{tpu_custom_call.1} parent=1 // pred_check_branch
      %72 = sbr.rel (0) target = $region25
    $region24: #{tpu_custom_call.1} parent=1 // pred_region
      %s74 = ssub.s32 2048, 2048
      %75 = vsyncadd [#allocation12], %s74
      %s76 = sshll.u32 [#allocation11], 4
      %s77 = int_to_ptr.vmem [resolvable:$true] %s76
      %82 = dma.hbm_to_vmem [thread:$0]  %s5, 2048, %s77, [#allocation12], 128, 128, 8
    $region25: #{tpu_custom_call.1} parent=1 // pred_fallthru
      _
    // Predicated region
    $region26: #{tpu_custom_call.1} parent=1 // pred_check
      _
    $region27: #{tpu_custom_call.1} parent=1 // pred_check_branch
      %84 = sbr.rel (0) target = $region29
    $region28: #{tpu_custom_call.1} parent=1 // pred_region
      %s86 = ssub.s32 16, 16
      %87 = vsyncadd [#allocation12], %s86
      %s89 = sshll.u32 [#allocation13], 4
      %s90 = int_to_ptr.vmem [resolvable:$true] %s89
      %92 = dma.hbm_to_vmem [thread:$0]  %s6, 16, %s90, [#allocation12]
    $region29: #{tpu_custom_call.1} parent=1 // pred_fallthru
      _
    // Predicated region
    $region30: #{tpu_custom_call.1} parent=1 // pred_check
      _
    $region31: #{tpu_custom_call.1} parent=1 // pred_check_branch
      %94 = sbr.rel (0) target = $region33
    $region32: #{tpu_custom_call.1} parent=1 // pred_region
      %95 = dma.done [#allocation3], 1536
    $region33: #{tpu_custom_call.1} parent=1 // pred_fallthru
      _
    // Predicated region
    $region34: #{tpu_custom_call.1} parent=1 // pred_check
      _
    $region35: #{tpu_custom_call.1} parent=1 // pred_check_branch
      %97 = sbr.rel (0) target = $region37
    $region36: #{tpu_custom_call.1} parent=1 // pred_region
      %98 = dma.done [#allocation6], 24576
    $region37: #{tpu_custom_call.1} parent=1 // pred_fallthru
      _
    // Predicated region
    $region38: #{tpu_custom_call.1} parent=1 // pred_check
      _
    $region39: #{tpu_custom_call.1} parent=1 // pred_check_branch
      %100 = sbr.rel (0) target = $region41
    $region40: #{tpu_custom_call.1} parent=1 // pred_region
      %101 = dma.done [#allocation6], 16
    $region41: #{tpu_custom_call.1} parent=1 // pred_fallthru
      _
    // Predicated region
    $region42: #{tpu_custom_call.1} parent=1 // pred_check
      _
    $region43: #{tpu_custom_call.1} parent=1 // pred_check_branch
      %103 = sbr.rel (0) target = $region45
    $region44: #{tpu_custom_call.1} parent=1 // pred_region
      %104 = dma.done [#allocation9], 2048
    $region45: #{tpu_custom_call.1} parent=1 // pred_fallthru
      _
    // Predicated region
    $region46: #{tpu_custom_call.1} parent=1 // pred_check
      _
    $region47: #{tpu_custom_call.1} parent=1 // pred_check_branch
      %106 = sbr.rel (0) target = $region49
    $region48: #{tpu_custom_call.1} parent=1 // pred_region
      %107 = dma.done [#allocation9], 16
    $region49: #{tpu_custom_call.1} parent=1 // pred_fallthru
      _
    // Predicated region
    $region50: #{tpu_custom_call.1} parent=1 // pred_check
      _
    $region51: #{tpu_custom_call.1} parent=1 // pred_check_branch
      %109 = sbr.rel (0) target = $region53
    $region52: #{tpu_custom_call.1} parent=1 // pred_region
      %110 = dma.done [#allocation12], 2048
    $region53: #{tpu_custom_call.1} parent=1 // pred_fallthru
      _
    // Predicated region
    $region54: #{tpu_custom_call.1} parent=1 // pred_check
      _
    $region55: #{tpu_custom_call.1} parent=1 // pred_check_branch
      %112 = sbr.rel (0) target = $region57
    $region56: #{tpu_custom_call.1} parent=1 // pred_region
      %113 = dma.done [#allocation12], 16
    $region57: #{tpu_custom_call.1} parent=1 // pred_fallthru
      _
    %v114 = vld [vmem:[#allocation2] sm:$0xff]
    %v115 = vld [vmem:[#allocation2 + $0x8] sm:$0xff]
    %v116 = vld [vmem:[#allocation2 + $0x10] sm:$0xff]
    %v117 = vld [vmem:[#allocation2 + $0x18] sm:$0xff]
    %v118 = vld [vmem:[#allocation2 + $0x20] sm:$0xff]
    %v119 = vld [vmem:[#allocation2 + $0x28] sm:$0xff]
    %v120 = vld [vmem:[#allocation2 + $0x30] sm:$0xff]
    %v121 = vld [vmem:[#allocation2 + $0x38] sm:$0xff]
    %v122 = vld [vmem:[#allocation2 + $0x40] sm:$0xff]
    %v123 = vld [vmem:[#allocation2 + $0x48] sm:$0xff]
    %v124 = vld [vmem:[#allocation2 + $0x50] sm:$0xff]
    %v125 = vld [vmem:[#allocation2 + $0x58] sm:$0xff]
    %v126 = vld [vmem:[#allocation5] sm:$0xff]
    %v127 = vld [vmem:[#allocation5 + $0x8] sm:$0xff]
    %v128 = vld [vmem:[#allocation5 + $0x10] sm:$0xff]
    %v129 = vld [vmem:[#allocation5 + $0x18] sm:$0xff]
    %v130 = vld [vmem:[#allocation5 + $0x20] sm:$0xff]
    %v131 = vld [vmem:[#allocation5 + $0x28] sm:$0xff]
    %v132 = vld [vmem:[#allocation5 + $0x30] sm:$0xff]
    %v133 = vld [vmem:[#allocation5 + $0x38] sm:$0xff]
    %v134 = vld [vmem:[#allocation5 + $0x40] sm:$0xff]
    %v135 = vld [vmem:[#allocation5 + $0x48] sm:$0xff]
    %v136 = vld [vmem:[#allocation5 + $0x50] sm:$0xff]
    %v137 = vld [vmem:[#allocation5 + $0x58] sm:$0xff]
    %v138 = vld [vmem:[#allocation5 + $0x60] sm:$0xff]
    %v139 = vld [vmem:[#allocation5 + $0x68] sm:$0xff]
    %v140 = vld [vmem:[#allocation5 + $0x70] sm:$0xff]
    %v141 = vld [vmem:[#allocation5 + $0x78] sm:$0xff]
    %v142 = vld [vmem:[#allocation5 + $0x80] sm:$0xff]
    %v143 = vld [vmem:[#allocation5 + $0x88] sm:$0xff]
    %v144 = vld [vmem:[#allocation5 + $0x90] sm:$0xff]
    %v145 = vld [vmem:[#allocation5 + $0x98] sm:$0xff]
    %v146 = vld [vmem:[#allocation5 + $0xa0] sm:$0xff]
    %v147 = vld [vmem:[#allocation5 + $0xa8] sm:$0xff]
    %v148 = vld [vmem:[#allocation5 + $0xb0] sm:$0xff]
    %v149 = vld [vmem:[#allocation5 + $0xb8] sm:$0xff]
    %v150 = vld [vmem:[#allocation5 + $0xc0] sm:$0xff]
    %v151 = vld [vmem:[#allocation5 + $0xc8] sm:$0xff]
    %v152 = vld [vmem:[#allocation5 + $0xd0] sm:$0xff]
    %v153 = vld [vmem:[#allocation5 + $0xd8] sm:$0xff]
    %v154 = vld [vmem:[#allocation5 + $0xe0] sm:$0xff]
    %v155 = vld [vmem:[#allocation5 + $0xe8] sm:$0xff]
    %v156 = vld [vmem:[#allocation5 + $0xf0] sm:$0xff]
    %v157 = vld [vmem:[#allocation5 + $0xf8] sm:$0xff]
    %v158 = vld [vmem:[#allocation5 + $0x100] sm:$0xff]
    %v159 = vld [vmem:[#allocation5 + $0x108] sm:$0xff]
    %v160 = vld [vmem:[#allocation5 + $0x110] sm:$0xff]
    %v161 = vld [vmem:[#allocation5 + $0x118] sm:$0xff]
    %v162 = vld [vmem:[#allocation5 + $0x120] sm:$0xff]
    %v163 = vld [vmem:[#allocation5 + $0x128] sm:$0xff]
    %v164 = vld [vmem:[#allocation5 + $0x130] sm:$0xff]
    %v165 = vld [vmem:[#allocation5 + $0x138] sm:$0xff]
    %v166 = vld [vmem:[#allocation5 + $0x140] sm:$0xff]
    %v167 = vld [vmem:[#allocation5 + $0x148] sm:$0xff]
    %v168 = vld [vmem:[#allocation5 + $0x150] sm:$0xff]
    %v169 = vld [vmem:[#allocation5 + $0x158] sm:$0xff]
    %v170 = vld [vmem:[#allocation5 + $0x160] sm:$0xff]
    %v171 = vld [vmem:[#allocation5 + $0x168] sm:$0xff]
    %v172 = vld [vmem:[#allocation5 + $0x170] sm:$0xff]
    %v173 = vld [vmem:[#allocation5 + $0x178] sm:$0xff]
    %v174 = vld [vmem:[#allocation5 + $0x180] sm:$0xff]
    %v175 = vld [vmem:[#allocation5 + $0x188] sm:$0xff]
    %v176 = vld [vmem:[#allocation5 + $0x190] sm:$0xff]
    %v177 = vld [vmem:[#allocation5 + $0x198] sm:$0xff]
    %v178 = vld [vmem:[#allocation5 + $0x1a0] sm:$0xff]
    %v179 = vld [vmem:[#allocation5 + $0x1a8] sm:$0xff]
    %v180 = vld [vmem:[#allocation5 + $0x1b0] sm:$0xff]
    %v181 = vld [vmem:[#allocation5 + $0x1b8] sm:$0xff]
    %v182 = vld [vmem:[#allocation5 + $0x1c0] sm:$0xff]
    %v183 = vld [vmem:[#allocation5 + $0x1c8] sm:$0xff]
    %v184 = vld [vmem:[#allocation5 + $0x1d0] sm:$0xff]
    %v185 = vld [vmem:[#allocation5 + $0x1d8] sm:$0xff]
    %v186 = vld [vmem:[#allocation5 + $0x1e0] sm:$0xff]
    %v187 = vld [vmem:[#allocation5 + $0x1e8] sm:$0xff]
    %v188 = vld [vmem:[#allocation5 + $0x1f0] sm:$0xff]
    %v189 = vld [vmem:[#allocation5 + $0x1f8] sm:$0xff]
    %v190 = vld [vmem:[#allocation5 + $0x200] sm:$0xff]
    %v191 = vld [vmem:[#allocation5 + $0x208] sm:$0xff]
    %v192 = vld [vmem:[#allocation5 + $0x210] sm:$0xff]
    %v193 = vld [vmem:[#allocation5 + $0x218] sm:$0xff]
    %v194 = vld [vmem:[#allocation5 + $0x220] sm:$0xff]
    %v195 = vld [vmem:[#allocation5 + $0x228] sm:$0xff]
    %v196 = vld [vmem:[#allocation5 + $0x230] sm:$0xff]
    %v197 = vld [vmem:[#allocation5 + $0x238] sm:$0xff]
    %v198 = vld [vmem:[#allocation5 + $0x240] sm:$0xff]
    %v199 = vld [vmem:[#allocation5 + $0x248] sm:$0xff]
    %v200 = vld [vmem:[#allocation5 + $0x250] sm:$0xff]
    %v201 = vld [vmem:[#allocation5 + $0x258] sm:$0xff]
    %v202 = vld [vmem:[#allocation5 + $0x260] sm:$0xff]
    %v203 = vld [vmem:[#allocation5 + $0x268] sm:$0xff]
    %v204 = vld [vmem:[#allocation5 + $0x270] sm:$0xff]
    %v205 = vld [vmem:[#allocation5 + $0x278] sm:$0xff]
    %v206 = vld [vmem:[#allocation5 + $0x280] sm:$0xff]
    %v207 = vld [vmem:[#allocation5 + $0x288] sm:$0xff]
    %v208 = vld [vmem:[#allocation5 + $0x290] sm:$0xff]
    %v209 = vld [vmem:[#allocation5 + $0x298] sm:$0xff]
    %v210 = vld [vmem:[#allocation5 + $0x2a0] sm:$0xff]
    %v211 = vld [vmem:[#allocation5 + $0x2a8] sm:$0xff]
    %v212 = vld [vmem:[#allocation5 + $0x2b0] sm:$0xff]
    %v213 = vld [vmem:[#allocation5 + $0x2b8] sm:$0xff]
    %v214 = vld [vmem:[#allocation5 + $0x2c0] sm:$0xff]
    %v215 = vld [vmem:[#allocation5 + $0x2c8] sm:$0xff]
    %v216 = vld [vmem:[#allocation5 + $0x2d0] sm:$0xff]
    %v217 = vld [vmem:[#allocation5 + $0x2d8] sm:$0xff]
    %v218 = vld [vmem:[#allocation5 + $0x2e0] sm:$0xff]
    %v219 = vld [vmem:[#allocation5 + $0x2e8] sm:$0xff]
    %v220 = vld [vmem:[#allocation5 + $0x2f0] sm:$0xff]
    %v221 = vld [vmem:[#allocation5 + $0x2f8] sm:$0xff]
    %v222 = vld [vmem:[#allocation5 + $0x300] sm:$0xff]
    %v223 = vld [vmem:[#allocation5 + $0x308] sm:$0xff]
    %v224 = vld [vmem:[#allocation5 + $0x310] sm:$0xff]
    %v225 = vld [vmem:[#allocation5 + $0x318] sm:$0xff]
    %v226 = vld [vmem:[#allocation5 + $0x320] sm:$0xff]
    %v227 = vld [vmem:[#allocation5 + $0x328] sm:$0xff]
    %v228 = vld [vmem:[#allocation5 + $0x330] sm:$0xff]
    %v229 = vld [vmem:[#allocation5 + $0x338] sm:$0xff]
    %v230 = vld [vmem:[#allocation5 + $0x340] sm:$0xff]
    %v231 = vld [vmem:[#allocation5 + $0x348] sm:$0xff]
    %v232 = vld [vmem:[#allocation5 + $0x350] sm:$0xff]
    %v233 = vld [vmem:[#allocation5 + $0x358] sm:$0xff]
    %v234 = vld [vmem:[#allocation5 + $0x360] sm:$0xff]
    %v235 = vld [vmem:[#allocation5 + $0x368] sm:$0xff]
    %v236 = vld [vmem:[#allocation5 + $0x370] sm:$0xff]
    %v237 = vld [vmem:[#allocation5 + $0x378] sm:$0xff]
    %v238 = vld [vmem:[#allocation5 + $0x380] sm:$0xff]
    %v239 = vld [vmem:[#allocation5 + $0x388] sm:$0xff]
    %v240 = vld [vmem:[#allocation5 + $0x390] sm:$0xff]
    %v241 = vld [vmem:[#allocation5 + $0x398] sm:$0xff]
    %v242 = vld [vmem:[#allocation5 + $0x3a0] sm:$0xff]
    %v243 = vld [vmem:[#allocation5 + $0x3a8] sm:$0xff]
    %v244 = vld [vmem:[#allocation5 + $0x3b0] sm:$0xff]
    %v245 = vld [vmem:[#allocation5 + $0x3b8] sm:$0xff]
    %v246 = vld [vmem:[#allocation5 + $0x3c0] sm:$0xff]
    %v247 = vld [vmem:[#allocation5 + $0x3c8] sm:$0xff]
    %v248 = vld [vmem:[#allocation5 + $0x3d0] sm:$0xff]
    %v249 = vld [vmem:[#allocation5 + $0x3d8] sm:$0xff]
    %v250 = vld [vmem:[#allocation5 + $0x3e0] sm:$0xff]
    %v251 = vld [vmem:[#allocation5 + $0x3e8] sm:$0xff]
    %v252 = vld [vmem:[#allocation5 + $0x3f0] sm:$0xff]
    %v253 = vld [vmem:[#allocation5 + $0x3f8] sm:$0xff]
    %v254 = vld [vmem:[#allocation5 + $0x400] sm:$0xff]
    %v255 = vld [vmem:[#allocation5 + $0x408] sm:$0xff]
    %v256 = vld [vmem:[#allocation5 + $0x410] sm:$0xff]
    %v257 = vld [vmem:[#allocation5 + $0x418] sm:$0xff]
    %v258 = vld [vmem:[#allocation5 + $0x420] sm:$0xff]
    %v259 = vld [vmem:[#allocation5 + $0x428] sm:$0xff]
    %v260 = vld [vmem:[#allocation5 + $0x430] sm:$0xff]
    %v261 = vld [vmem:[#allocation5 + $0x438] sm:$0xff]
    %v262 = vld [vmem:[#allocation5 + $0x440] sm:$0xff]
    %v263 = vld [vmem:[#allocation5 + $0x448] sm:$0xff]
    %v264 = vld [vmem:[#allocation5 + $0x450] sm:$0xff]
    %v265 = vld [vmem:[#allocation5 + $0x458] sm:$0xff]
    %v266 = vld [vmem:[#allocation5 + $0x460] sm:$0xff]
    %v267 = vld [vmem:[#allocation5 + $0x468] sm:$0xff]
    %v268 = vld [vmem:[#allocation5 + $0x470] sm:$0xff]
    %v269 = vld [vmem:[#allocation5 + $0x478] sm:$0xff]
    %v270 = vld [vmem:[#allocation5 + $0x480] sm:$0xff]
    %v271 = vld [vmem:[#allocation5 + $0x488] sm:$0xff]
    %v272 = vld [vmem:[#allocation5 + $0x490] sm:$0xff]
    %v273 = vld [vmem:[#allocation5 + $0x498] sm:$0xff]
    %v274 = vld [vmem:[#allocation5 + $0x4a0] sm:$0xff]
    %v275 = vld [vmem:[#allocation5 + $0x4a8] sm:$0xff]
    %v276 = vld [vmem:[#allocation5 + $0x4b0] sm:$0xff]
    %v277 = vld [vmem:[#allocation5 + $0x4b8] sm:$0xff]
    %v278 = vld [vmem:[#allocation5 + $0x4c0] sm:$0xff]
    %v279 = vld [vmem:[#allocation5 + $0x4c8] sm:$0xff]
    %v280 = vld [vmem:[#allocation5 + $0x4d0] sm:$0xff]
    %v281 = vld [vmem:[#allocation5 + $0x4d8] sm:$0xff]
    %v282 = vld [vmem:[#allocation5 + $0x4e0] sm:$0xff]
    %v283 = vld [vmem:[#allocation5 + $0x4e8] sm:$0xff]
    %v284 = vld [vmem:[#allocation5 + $0x4f0] sm:$0xff]
    %v285 = vld [vmem:[#allocation5 + $0x4f8] sm:$0xff]
    %v286 = vld [vmem:[#allocation5 + $0x500] sm:$0xff]
    %v287 = vld [vmem:[#allocation5 + $0x508] sm:$0xff]
    %v288 = vld [vmem:[#allocation5 + $0x510] sm:$0xff]
    %v289 = vld [vmem:[#allocation5 + $0x518] sm:$0xff]
    %v290 = vld [vmem:[#allocation5 + $0x520] sm:$0xff]
    %v291 = vld [vmem:[#allocation5 + $0x528] sm:$0xff]
    %v292 = vld [vmem:[#allocation5 + $0x530] sm:$0xff]
    %v293 = vld [vmem:[#allocation5 + $0x538] sm:$0xff]
    %v294 = vld [vmem:[#allocation5 + $0x540] sm:$0xff]
    %v295 = vld [vmem:[#allocation5 + $0x548] sm:$0xff]
    %v296 = vld [vmem:[#allocation5 + $0x550] sm:$0xff]
    %v297 = vld [vmem:[#allocation5 + $0x558] sm:$0xff]
    %v298 = vld [vmem:[#allocation5 + $0x560] sm:$0xff]
    %v299 = vld [vmem:[#allocation5 + $0x568] sm:$0xff]
    %v300 = vld [vmem:[#allocation5 + $0x570] sm:$0xff]
    %v301 = vld [vmem:[#allocation5 + $0x578] sm:$0xff]
    %v302 = vld [vmem:[#allocation5 + $0x580] sm:$0xff]
    %v303 = vld [vmem:[#allocation5 + $0x588] sm:$0xff]
    %v304 = vld [vmem:[#allocation5 + $0x590] sm:$0xff]
    %v305 = vld [vmem:[#allocation5 + $0x598] sm:$0xff]
    %v306 = vld [vmem:[#allocation5 + $0x5a0] sm:$0xff]
    %v307 = vld [vmem:[#allocation5 + $0x5a8] sm:$0xff]
    %v308 = vld [vmem:[#allocation5 + $0x5b0] sm:$0xff]
    %v309 = vld [vmem:[#allocation5 + $0x5b8] sm:$0xff]
    %v310 = vld [vmem:[#allocation5 + $0x5c0] sm:$0xff]
    %v311 = vld [vmem:[#allocation5 + $0x5c8] sm:$0xff]
    %v312 = vld [vmem:[#allocation5 + $0x5d0] sm:$0xff]
    %v313 = vld [vmem:[#allocation5 + $0x5d8] sm:$0xff]
    %v314 = vld [vmem:[#allocation5 + $0x5e0] sm:$0xff]
    %v315 = vld [vmem:[#allocation5 + $0x5e8] sm:$0xff]
    %v316 = vld [vmem:[#allocation5 + $0x5f0] sm:$0xff]
    %v317 = vld [vmem:[#allocation5 + $0x5f8] sm:$0xff]
    %v318 = vld [vmem:[#allocation7] sm:$0x1]
    %v320 = vlaneseq
    %v321 = vshrl.u32 %v320, 7
    %v322 = vsub.s32 0, %v321
    %v323 = vrot.slane %v318, %v322
    %325 = vmatprep.subr.mxu0 0.0
    %326 = vmatpush1.msra.mxu0 %v126
    %327 = vmatprep.subr.mxu0 0.0
    %328 = vmatpush1.msra.mxu0 %v127
    %329 = vmatprep.subr.mxu0 0.0
    %330 = vmatpush1.msra.mxu0 %v128
    %331 = vmatprep.subr.mxu0 0.0
    %332 = vmatpush1.msra.mxu0 %v129
    %333 = vmatprep.subr.mxu0 0.0
    %334 = vmatpush1.msra.mxu0 %v130
    %335 = vmatprep.subr.mxu0 0.0
    %336 = vmatpush1.msra.mxu0 %v131
    %337 = vmatprep.subr.mxu0 0.0
    %338 = vmatpush1.msra.mxu0 %v132
    %339 = vmatprep.subr.mxu0 0.0
    %340 = vmatpush1.msra.mxu0 %v133
    %341 = vmatprep.subr.mxu0 0.0
    %342 = vmatpush1.msra.mxu0 %v134
    %343 = vmatprep.subr.mxu0 0.0
    %344 = vmatpush1.msra.mxu0 %v135
    %345 = vmatprep.subr.mxu0 0.0
    %346 = vmatpush1.msra.mxu0 %v136
    %347 = vmatprep.subr.mxu0 0.0
    %348 = vmatpush1.msra.mxu0 %v137
    %349 = vmatprep.subr.mxu0 0.0
    %350 = vmatpush1.msra.mxu0 %v138
    %351 = vmatprep.subr.mxu0 0.0
    %352 = vmatpush1.msra.mxu0 %v139
    %353 = vmatprep.subr.mxu0 0.0
    %354 = vmatpush1.msra.mxu0 %v140
    %355 = vmatprep.subr.mxu0 0.0
    %356 = vmatpush1.msra.mxu0 %v141
    %357 = vmatprep.subr.mxu0 0.0
    %358 = vmatpush1.msra.mxu0 %v142
    %359 = vmatprep.subr.mxu0 0.0
    %360 = vmatpush1.msra.mxu0 %v143
    %361 = vmatprep.subr.mxu0 0.0
    %362 = vmatpush1.msra.mxu0 %v144
    %363 = vmatprep.subr.mxu0 0.0
    %364 = vmatpush1.msra.mxu0 %v145
    %365 = vmatprep.subr.mxu0 0.0
    %366 = vmatpush1.msra.mxu0 %v146
    %367 = vmatprep.subr.mxu0 0.0
    %368 = vmatpush1.msra.mxu0 %v147
    %369 = vmatprep.subr.mxu0 0.0
    %370 = vmatpush1.msra.mxu0 %v148
    %371 = vmatprep.subr.mxu0 0.0
    %372 = vmatpush1.msra.mxu0 %v149
    %373 = vmatprep.subr.mxu0 0.0
    %374 = vmatpush1.msra.mxu0 %v150
    %375 = vmatprep.subr.mxu0 0.0
    %376 = vmatpush1.msra.mxu0 %v151
    %377 = vmatprep.subr.mxu0 0.0
    %378 = vmatpush1.msra.mxu0 %v152
    %379 = vmatprep.subr.mxu0 0.0
    %380 = vmatpush1.msra.mxu0 %v153
    %381 = vmatprep.subr.mxu0 0.0
    %382 = vmatpush1.msra.mxu0 %v154
    %383 = vmatprep.subr.mxu0 0.0
    %384 = vmatpush1.msra.mxu0 %v155
    %385 = vmatprep.subr.mxu0 0.0
    %386 = vmatpush1.msra.mxu0 %v156
    %387 = vmatprep.subr.mxu0 0.0
    %388 = vmatpush1.msra.mxu0 %v157
    %389 = vmatprep.mubr.f32.mxu0 %v115
    %390 = vmatmul.mubr.f32.gmra.mrb[0].mxu0 %v114
    %v391 = vpop.f32.mrb[0].mxu0
    %v392 = vadd.f32 %v323, %v391
    %v393 = vpop.f32.mrb[0].mxu0
    %394 = vdwg.mxu0
    %395 = vmatprep.subr.mxu0 0.0
    %396 = vmatpush1.msra.mxu0 %v158
    %397 = vmatprep.subr.mxu0 0.0
    %398 = vmatpush1.msra.mxu0 %v159
    %399 = vmatprep.subr.mxu0 0.0
    %400 = vmatpush1.msra.mxu0 %v160
    %401 = vmatprep.subr.mxu0 0.0
    %402 = vmatpush1.msra.mxu0 %v161
    %403 = vmatprep.subr.mxu0 0.0
    %404 = vmatpush1.msra.mxu0 %v162
    %405 = vmatprep.subr.mxu0 0.0
    %406 = vmatpush1.msra.mxu0 %v163
    %407 = vmatprep.subr.mxu0 0.0
    %408 = vmatpush1.msra.mxu0 %v164
    %409 = vmatprep.subr.mxu0 0.0
    %410 = vmatpush1.msra.mxu0 %v165
    %411 = vmatprep.subr.mxu0 0.0
    %412 = vmatpush1.msra.mxu0 %v166
    %413 = vmatprep.subr.mxu0 0.0
    %414 = vmatpush1.msra.mxu0 %v167
    %415 = vmatprep.subr.mxu0 0.0
    %416 = vmatpush1.msra.mxu0 %v168
    %417 = vmatprep.subr.mxu0 0.0
    %418 = vmatpush1.msra.mxu0 %v169
    %419 = vmatprep.subr.mxu0 0.0
    %420 = vmatpush1.msra.mxu0 %v170
    %421 = vmatprep.subr.mxu0 0.0
    %422 = vmatpush1.msra.mxu0 %v171
    %423 = vmatprep.subr.mxu0 0.0
    %424 = vmatpush1.msra.mxu0 %v172
    %425 = vmatprep.subr.mxu0 0.0
    %426 = vmatpush1.msra.mxu0 %v173
    %427 = vmatprep.subr.mxu0 0.0
    %428 = vmatpush1.msra.mxu0 %v174
    %429 = vmatprep.subr.mxu0 0.0
    %430 = vmatpush1.msra.mxu0 %v175
    %431 = vmatprep.subr.mxu0 0.0
    %432 = vmatpush1.msra.mxu0 %v176
    %433 = vmatprep.subr.mxu0 0.0
    %434 = vmatpush1.msra.mxu0 %v177
    %435 = vmatprep.subr.mxu0 0.0
    %436 = vmatpush1.msra.mxu0 %v178
    %437 = vmatprep.subr.mxu0 0.0
    %438 = vmatpush1.msra.mxu0 %v179
    %439 = vmatprep.subr.mxu0 0.0
    %440 = vmatpush1.msra.mxu0 %v180
    %441 = vmatprep.subr.mxu0 0.0
    %442 = vmatpush1.msra.mxu0 %v181
    %443 = vmatprep.subr.mxu0 0.0
    %444 = vmatpush1.msra.mxu0 %v182
    %445 = vmatprep.subr.mxu0 0.0
    %446 = vmatpush1.msra.mxu0 %v183
    %447 = vmatprep.subr.mxu0 0.0
    %448 = vmatpush1.msra.mxu0 %v184
    %449 = vmatprep.subr.mxu0 0.0
    %450 = vmatpush1.msra.mxu0 %v185
    %451 = vmatprep.subr.mxu0 0.0
    %452 = vmatpush1.msra.mxu0 %v186
    %453 = vmatprep.subr.mxu0 0.0
    %454 = vmatpush1.msra.mxu0 %v187
    %455 = vmatprep.subr.mxu0 0.0
    %456 = vmatpush1.msra.mxu0 %v188
    %457 = vmatprep.subr.mxu0 0.0
    %458 = vmatpush1.msra.mxu0 %v189
    %459 = vmatprep.mubr.f32.mxu0 %v117
    %460 = vmatmul.mubr.f32.gmra.mrb[0].mxu0 %v116
    %v461 = vpop.f32.mrb[0].mxu0
    %v462 = vadd.f32 %v392, %v461
    %v463 = vpop.f32.mrb[0].mxu0
    %464 = vdwg.mxu0
    %465 = vmatprep.subr.mxu0 0.0
    %466 = vmatpush1.msra.mxu0 %v190
    %467 = vmatprep.subr.mxu0 0.0
    %468 = vmatpush1.msra.mxu0 %v191
    %469 = vmatprep.subr.mxu0 0.0
    %470 = vmatpush1.msra.mxu0 %v192
    %471 = vmatprep.subr.mxu0 0.0
    %472 = vmatpush1.msra.mxu0 %v193
    %473 = vmatprep.subr.mxu0 0.0
    %474 = vmatpush1.msra.mxu0 %v194
    %475 = vmatprep.subr.mxu0 0.0
    %476 = vmatpush1.msra.mxu0 %v195
    %477 = vmatprep.subr.mxu0 0.0
    %478 = vmatpush1.msra.mxu0 %v196
    %479 = vmatprep.subr.mxu0 0.0
    %480 = vmatpush1.msra.mxu0 %v197
    %481 = vmatprep.subr.mxu0 0.0
    %482 = vmatpush1.msra.mxu0 %v198
    %483 = vmatprep.subr.mxu0 0.0
    %484 = vmatpush1.msra.mxu0 %v199
    %485 = vmatprep.subr.mxu0 0.0
    %486 = vmatpush1.msra.mxu0 %v200
    %487 = vmatprep.subr.mxu0 0.0
    %488 = vmatpush1.msra.mxu0 %v201
    %489 = vmatprep.subr.mxu0 0.0
    %490 = vmatpush1.msra.mxu0 %v202
    %491 = vmatprep.subr.mxu0 0.0
    %492 = vmatpush1.msra.mxu0 %v203
    %493 = vmatprep.subr.mxu0 0.0
    %494 = vmatpush1.msra.mxu0 %v204
    %495 = vmatprep.subr.mxu0 0.0
    %496 = vmatpush1.msra.mxu0 %v205
    %497 = vmatprep.subr.mxu0 0.0
    %498 = vmatpush1.msra.mxu0 %v206
    %499 = vmatprep.subr.mxu0 0.0
    %500 = vmatpush1.msra.mxu0 %v207
    %501 = vmatprep.subr.mxu0 0.0
    %502 = vmatpush1.msra.mxu0 %v208
    %503 = vmatprep.subr.mxu0 0.0
    %504 = vmatpush1.msra.mxu0 %v209
    %505 = vmatprep.subr.mxu0 0.0
    %506 = vmatpush1.msra.mxu0 %v210
    %507 = vmatprep.subr.mxu0 0.0
    %508 = vmatpush1.msra.mxu0 %v211
    %509 = vmatprep.subr.mxu0 0.0
    %510 = vmatpush1.msra.mxu0 %v212
    %511 = vmatprep.subr.mxu0 0.0
    %512 = vmatpush1.msra.mxu0 %v213
    %513 = vmatprep.subr.mxu0 0.0
    %514 = vmatpush1.msra.mxu0 %v214
    %515 = vmatprep.subr.mxu0 0.0
    %516 = vmatpush1.msra.mxu0 %v215
    %517 = vmatprep.subr.mxu0 0.0
    %518 = vmatpush1.msra.mxu0 %v216
    %519 = vmatprep.subr.mxu0 0.0
    %520 = vmatpush1.msra.mxu0 %v217
    %521 = vmatprep.subr.mxu0 0.0
    %522 = vmatpush1.msra.mxu0 %v218
    %523 = vmatprep.subr.mxu0 0.0
    %524 = vmatpush1.msra.mxu0 %v219
    %525 = vmatprep.subr.mxu0 0.0
    %526 = vmatpush1.msra.mxu0 %v220
    %527 = vmatprep.subr.mxu0 0.0
    %528 = vmatpush1.msra.mxu0 %v221
    %529 = vmatprep.mubr.f32.mxu0 %v119
    %530 = vmatmul.mubr.f32.gmra.mrb[0].mxu0 %v118
    %v531 = vpop.f32.mrb[0].mxu0
    %v532 = vadd.f32 %v462, %v531
    %v533 = vpop.f32.mrb[0].mxu0
    %534 = vdwg.mxu0
    %535 = vmatprep.subr.mxu0 0.0
    %536 = vmatpush1.msra.mxu0 %v222
    %537 = vmatprep.subr.mxu0 0.0
    %538 = vmatpush1.msra.mxu0 %v223
    %539 = vmatprep.subr.mxu0 0.0
    %540 = vmatpush1.msra.mxu0 %v224
    %541 = vmatprep.subr.mxu0 0.0
    %542 = vmatpush1.msra.mxu0 %v225
    %543 = vmatprep.subr.mxu0 0.0
    %544 = vmatpush1.msra.mxu0 %v226
    %545 = vmatprep.subr.mxu0 0.0
    %546 = vmatpush1.msra.mxu0 %v227
    %547 = vmatprep.subr.mxu0 0.0
    %548 = vmatpush1.msra.mxu0 %v228
    %549 = vmatprep.subr.mxu0 0.0
    %550 = vmatpush1.msra.mxu0 %v229
    %551 = vmatprep.subr.mxu0 0.0
    %552 = vmatpush1.msra.mxu0 %v230
    %553 = vmatprep.subr.mxu0 0.0
    %554 = vmatpush1.msra.mxu0 %v231
    %555 = vmatprep.subr.mxu0 0.0
    %556 = vmatpush1.msra.mxu0 %v232
    %557 = vmatprep.subr.mxu0 0.0
    %558 = vmatpush1.msra.mxu0 %v233
    %559 = vmatprep.subr.mxu0 0.0
    %560 = vmatpush1.msra.mxu0 %v234
    %561 = vmatprep.subr.mxu0 0.0
    %562 = vmatpush1.msra.mxu0 %v235
    %563 = vmatprep.subr.mxu0 0.0
    %564 = vmatpush1.msra.mxu0 %v236
    %565 = vmatprep.subr.mxu0 0.0
    %566 = vmatpush1.msra.mxu0 %v237
    %567 = vmatprep.subr.mxu0 0.0
    %568 = vmatpush1.msra.mxu0 %v238
    %569 = vmatprep.subr.mxu0 0.0
    %570 = vmatpush1.msra.mxu0 %v239
    %571 = vmatprep.subr.mxu0 0.0
    %572 = vmatpush1.msra.mxu0 %v240
    %573 = vmatprep.subr.mxu0 0.0
    %574 = vmatpush1.msra.mxu0 %v241
    %575 = vmatprep.subr.mxu0 0.0
    %576 = vmatpush1.msra.mxu0 %v242
    %577 = vmatprep.subr.mxu0 0.0
    %578 = vmatpush1.msra.mxu0 %v243
    %579 = vmatprep.subr.mxu0 0.0
    %580 = vmatpush1.msra.mxu0 %v244
    %581 = vmatprep.subr.mxu0 0.0
    %582 = vmatpush1.msra.mxu0 %v245
    %583 = vmatprep.subr.mxu0 0.0
    %584 = vmatpush1.msra.mxu0 %v246
    %585 = vmatprep.subr.mxu0 0.0
    %586 = vmatpush1.msra.mxu0 %v247
    %587 = vmatprep.subr.mxu0 0.0
    %588 = vmatpush1.msra.mxu0 %v248
    %589 = vmatprep.subr.mxu0 0.0
    %590 = vmatpush1.msra.mxu0 %v249
    %591 = vmatprep.subr.mxu0 0.0
    %592 = vmatpush1.msra.mxu0 %v250
    %593 = vmatprep.subr.mxu0 0.0
    %594 = vmatpush1.msra.mxu0 %v251
    %595 = vmatprep.subr.mxu0 0.0
    %596 = vmatpush1.msra.mxu0 %v252
    %597 = vmatprep.subr.mxu0 0.0
    %598 = vmatpush1.msra.mxu0 %v253
    %599 = vmatprep.mubr.f32.mxu0 %v121
    %600 = vmatmul.mubr.f32.gmra.mrb[0].mxu0 %v120
    %v601 = vpop.f32.mrb[0].mxu0
    %v602 = vadd.f32 %v532, %v601
    %v603 = vpop.f32.mrb[0].mxu0
    %604 = vdwg.mxu0
    %605 = vmatprep.subr.mxu0 0.0
    %606 = vmatpush1.msra.mxu0 %v254
    %607 = vmatprep.subr.mxu0 0.0
    %608 = vmatpush1.msra.mxu0 %v255
    %609 = vmatprep.subr.mxu0 0.0
    %610 = vmatpush1.msra.mxu0 %v256
    %611 = vmatprep.subr.mxu0 0.0
    %612 = vmatpush1.msra.mxu0 %v257
    %613 = vmatprep.subr.mxu0 0.0
    %614 = vmatpush1.msra.mxu0 %v258
    %615 = vmatprep.subr.mxu0 0.0
    %616 = vmatpush1.msra.mxu0 %v259
    %617 = vmatprep.subr.mxu0 0.0
    %618 = vmatpush1.msra.mxu0 %v260
    %619 = vmatprep.subr.mxu0 0.0
    %620 = vmatpush1.msra.mxu0 %v261
    %621 = vmatprep.subr.mxu0 0.0
    %622 = vmatpush1.msra.mxu0 %v262
    %623 = vmatprep.subr.mxu0 0.0
    %624 = vmatpush1.msra.mxu0 %v263
    %625 = vmatprep.subr.mxu0 0.0
    %626 = vmatpush1.msra.mxu0 %v264
    %627 = vmatprep.subr.mxu0 0.0
    %628 = vmatpush1.msra.mxu0 %v265
    %629 = vmatprep.subr.mxu0 0.0
    %630 = vmatpush1.msra.mxu0 %v266
    %631 = vmatprep.subr.mxu0 0.0
    %632 = vmatpush1.msra.mxu0 %v267
    %633 = vmatprep.subr.mxu0 0.0
    %634 = vmatpush1.msra.mxu0 %v268
    %635 = vmatprep.subr.mxu0 0.0
    %636 = vmatpush1.msra.mxu0 %v269
    %637 = vmatprep.subr.mxu0 0.0
    %638 = vmatpush1.msra.mxu0 %v270
    %639 = vmatprep.subr.mxu0 0.0
    %640 = vmatpush1.msra.mxu0 %v271
    %641 = vmatprep.subr.mxu0 0.0
    %642 = vmatpush1.msra.mxu0 %v272
    %643 = vmatprep.subr.mxu0 0.0
    %644 = vmatpush1.msra.mxu0 %v273
    %645 = vmatprep.subr.mxu0 0.0
    %646 = vmatpush1.msra.mxu0 %v274
    %647 = vmatprep.subr.mxu0 0.0
    %648 = vmatpush1.msra.mxu0 %v275
    %649 = vmatprep.subr.mxu0 0.0
    %650 = vmatpush1.msra.mxu0 %v276
    %651 = vmatprep.subr.mxu0 0.0
    %652 = vmatpush1.msra.mxu0 %v277
    %653 = vmatprep.subr.mxu0 0.0
    %654 = vmatpush1.msra.mxu0 %v278
    %655 = vmatprep.subr.mxu0 0.0
    %656 = vmatpush1.msra.mxu0 %v279
    %657 = vmatprep.subr.mxu0 0.0
    %658 = vmatpush1.msra.mxu0 %v280
    %659 = vmatprep.subr.mxu0 0.0
    %660 = vmatpush1.msra.mxu0 %v281
    %661 = vmatprep.subr.mxu0 0.0
    %662 = vmatpush1.msra.mxu0 %v282
    %663 = vmatprep.subr.mxu0 0.0
    %664 = vmatpush1.msra.mxu0 %v283
    %665 = vmatprep.subr.mxu0 0.0
    %666 = vmatpush1.msra.mxu0 %v284
    %667 = vmatprep.subr.mxu0 0.0
    %668 = vmatpush1.msra.mxu0 %v285
    %669 = vmatprep.mubr.f32.mxu0 %v123
    %670 = vmatmul.mubr.f32.gmra.mrb[0].mxu0 %v122
    %v671 = vpop.f32.mrb[0].mxu0
    %v672 = vadd.f32 %v602, %v671
    %v673 = vpop.f32.mrb[0].mxu0
    %674 = vdwg.mxu0
    %675 = vmatprep.subr.mxu0 0.0
    %676 = vmatpush1.msra.mxu0 %v286
    %677 = vmatprep.subr.mxu0 0.0
    %678 = vmatpush1.msra.mxu0 %v287
    %679 = vmatprep.subr.mxu0 0.0
    %680 = vmatpush1.msra.mxu0 %v288
    %681 = vmatprep.subr.mxu0 0.0
    %682 = vmatpush1.msra.mxu0 %v289
    %683 = vmatprep.subr.mxu0 0.0
    %684 = vmatpush1.msra.mxu0 %v290
    %685 = vmatprep.subr.mxu0 0.0
    %686 = vmatpush1.msra.mxu0 %v291
    %687 = vmatprep.subr.mxu0 0.0
    %688 = vmatpush1.msra.mxu0 %v292
    %689 = vmatprep.subr.mxu0 0.0
    %690 = vmatpush1.msra.mxu0 %v293
    %691 = vmatprep.subr.mxu0 0.0
    %692 = vmatpush1.msra.mxu0 %v294
    %693 = vmatprep.subr.mxu0 0.0
    %694 = vmatpush1.msra.mxu0 %v295
    %695 = vmatprep.subr.mxu0 0.0
    %696 = vmatpush1.msra.mxu0 %v296
    %697 = vmatprep.subr.mxu0 0.0
    %698 = vmatpush1.msra.mxu0 %v297
    %699 = vmatprep.subr.mxu0 0.0
    %700 = vmatpush1.msra.mxu0 %v298
    %701 = vmatprep.subr.mxu0 0.0
    %702 = vmatpush1.msra.mxu0 %v299
    %703 = vmatprep.subr.mxu0 0.0
    %704 = vmatpush1.msra.mxu0 %v300
    %705 = vmatprep.subr.mxu0 0.0
    %706 = vmatpush1.msra.mxu0 %v301
    %707 = vmatprep.subr.mxu0 0.0
    %708 = vmatpush1.msra.mxu0 %v302
    %709 = vmatprep.subr.mxu0 0.0
    %710 = vmatpush1.msra.mxu0 %v303
    %711 = vmatprep.subr.mxu0 0.0
    %712 = vmatpush1.msra.mxu0 %v304
    %713 = vmatprep.subr.mxu0 0.0
    %714 = vmatpush1.msra.mxu0 %v305
    %715 = vmatprep.subr.mxu0 0.0
    %716 = vmatpush1.msra.mxu0 %v306
    %717 = vmatprep.subr.mxu0 0.0
    %718 = vmatpush1.msra.mxu0 %v307
    %719 = vmatprep.subr.mxu0 0.0
    %720 = vmatpush1.msra.mxu0 %v308
    %721 = vmatprep.subr.mxu0 0.0
    %722 = vmatpush1.msra.mxu0 %v309
    %723 = vmatprep.subr.mxu0 0.0
    %724 = vmatpush1.msra.mxu0 %v310
    %725 = vmatprep.subr.mxu0 0.0
    %726 = vmatpush1.msra.mxu0 %v311
    %727 = vmatprep.subr.mxu0 0.0
    %728 = vmatpush1.msra.mxu0 %v312
    %729 = vmatprep.subr.mxu0 0.0
    %730 = vmatpush1.msra.mxu0 %v313
    %731 = vmatprep.subr.mxu0 0.0
    %732 = vmatpush1.msra.mxu0 %v314
    %733 = vmatprep.subr.mxu0 0.0
    %734 = vmatpush1.msra.mxu0 %v315
    %735 = vmatprep.subr.mxu0 0.0
    %736 = vmatpush1.msra.mxu0 %v316
    %737 = vmatprep.subr.mxu0 0.0
    %738 = vmatpush1.msra.mxu0 %v317
    %739 = vmatprep.mubr.f32.mxu0 %v125
    %740 = vmatmul.mubr.f32.gmra.mrb[0].mxu0 %v124
    %v741 = vpop.f32.mrb[0].mxu0
    %v742 = vadd.f32 %v672, %v741
    %v743 = vpop.f32.mrb[0].mxu0
    %744 = vdwg.mxu0
    %v745 = vmax.f32 %v742, 0.0
    %v746 = vld [vmem:[#allocation8] sm:$0xff]
    %v747 = vld [vmem:[#allocation8 + $0x8] sm:$0xff]
    %v748 = vld [vmem:[#allocation8 + $0x10] sm:$0xff]
    %v749 = vld [vmem:[#allocation8 + $0x18] sm:$0xff]
    %v750 = vld [vmem:[#allocation8 + $0x20] sm:$0xff]
    %v751 = vld [vmem:[#allocation8 + $0x28] sm:$0xff]
    %v752 = vld [vmem:[#allocation8 + $0x30] sm:$0xff]
    %v753 = vld [vmem:[#allocation8 + $0x38] sm:$0xff]
    %v754 = vld [vmem:[#allocation8 + $0x40] sm:$0xff]
    %v755 = vld [vmem:[#allocation8 + $0x48] sm:$0xff]
    %v756 = vld [vmem:[#allocation8 + $0x50] sm:$0xff]
    %v757 = vld [vmem:[#allocation8 + $0x58] sm:$0xff]
    %v758 = vld [vmem:[#allocation8 + $0x60] sm:$0xff]
    %v759 = vld [vmem:[#allocation8 + $0x68] sm:$0xff]
    %v760 = vld [vmem:[#allocation8 + $0x70] sm:$0xff]
    %v761 = vld [vmem:[#allocation8 + $0x78] sm:$0xff]
    %v762 = vld [vmem:[#allocation10] sm:$0x1]
    %v764 = vlaneseq
    %v765 = vshrl.u32 %v764, 7
    %v766 = vsub.s32 0, %v765
    %v767 = vrot.slane %v762, %v766
    %769 = vmatprep.subr.mxu0 0.0
    %770 = vmatpush1.msra.mxu0 %v746
    %771 = vmatprep.subr.mxu0 0.0
    %772 = vmatpush1.msra.mxu0 %v747
    %773 = vmatprep.subr.mxu0 0.0
    %774 = vmatpush1.msra.mxu0 %v748
    %775 = vmatprep.subr.mxu0 0.0
    %776 = vmatpush1.msra.mxu0 %v749
    %777 = vmatprep.subr.mxu0 0.0
    %778 = vmatpush1.msra.mxu0 %v750
    %779 = vmatprep.subr.mxu0 0.0
    %780 = vmatpush1.msra.mxu0 %v751
    %781 = vmatprep.subr.mxu0 0.0
    %782 = vmatpush1.msra.mxu0 %v752
    %783 = vmatprep.subr.mxu0 0.0
    %784 = vmatpush1.msra.mxu0 %v753
    %785 = vmatprep.subr.mxu0 0.0
    %786 = vmatpush1.msra.mxu0 %v754
    %787 = vmatprep.subr.mxu0 0.0
    %788 = vmatpush1.msra.mxu0 %v755
    %789 = vmatprep.subr.mxu0 0.0
    %790 = vmatpush1.msra.mxu0 %v756
    %791 = vmatprep.subr.mxu0 0.0
    %792 = vmatpush1.msra.mxu0 %v757
    %793 = vmatprep.subr.mxu0 0.0
    %794 = vmatpush1.msra.mxu0 %v758
    %795 = vmatprep.subr.mxu0 0.0
    %796 = vmatpush1.msra.mxu0 %v759
    %797 = vmatprep.subr.mxu0 0.0
    %798 = vmatpush1.msra.mxu0 %v760
    %799 = vmatprep.subr.mxu0 0.0
    %800 = vmatpush1.msra.mxu0 %v761
    %801 = vmatprep.subr.mxu0 0.0
    %802 = vmatpush1.msra.mxu0 0.0
    %803 = vmatprep.subr.mxu0 0.0
    %804 = vmatpush1.msra.mxu0 0.0
    %805 = vmatprep.subr.mxu0 0.0
    %806 = vmatpush1.msra.mxu0 0.0
    %807 = vmatprep.subr.mxu0 0.0
    %808 = vmatpush1.msra.mxu0 0.0
    %809 = vmatprep.subr.mxu0 0.0
    %810 = vmatpush1.msra.mxu0 0.0
    %811 = vmatprep.subr.mxu0 0.0
    %812 = vmatpush1.msra.mxu0 0.0
    %813 = vmatprep.subr.mxu0 0.0
    %814 = vmatpush1.msra.mxu0 0.0
    %815 = vmatprep.subr.mxu0 0.0
    %816 = vmatpush1.msra.mxu0 0.0
    %817 = vmatprep.subr.mxu0 0.0
    %818 = vmatpush1.msra.mxu0 0.0
    %819 = vmatprep.subr.mxu0 0.0
    %820 = vmatpush1.msra.mxu0 0.0
    %821 = vmatprep.subr.mxu0 0.0
    %822 = vmatpush1.msra.mxu0 0.0
    %823 = vmatprep.subr.mxu0 0.0
    %824 = vmatpush1.msra.mxu0 0.0
    %825 = vmatprep.subr.mxu0 0.0
    %826 = vmatpush1.msra.mxu0 0.0
    %827 = vmatprep.subr.mxu0 0.0
    %828 = vmatpush1.msra.mxu0 0.0
    %829 = vmatprep.subr.mxu0 0.0
    %830 = vmatpush1.msra.mxu0 0.0
    %831 = vmatprep.subr.mxu0 0.0
    %832 = vmatpush1.msra.mxu0 0.0
    %833 = vmatprep.mubr.f32.mxu0 0.0
    %834 = vmatmul.mubr.f32.gmra.mrb[0].mxu0 %v745
    %v835 = vpop.f32.mrb[0].mxu0
    %v836 = vadd.f32 %v767, %v835
    %v837 = vpop.f32.mrb[0].mxu0
    %838 = vdwg.mxu0
    %v839 = vmax.f32 %v836, 0.0
    %v840 = vld [vmem:[#allocation11] sm:$0xff]
    %v841 = vld [vmem:[#allocation11 + $0x8] sm:$0xff]
    %v842 = vld [vmem:[#allocation11 + $0x10] sm:$0xff]
    %v843 = vld [vmem:[#allocation11 + $0x18] sm:$0xff]
    %v844 = vld [vmem:[#allocation11 + $0x20] sm:$0xff]
    %v845 = vld [vmem:[#allocation11 + $0x28] sm:$0xff]
    %v846 = vld [vmem:[#allocation11 + $0x30] sm:$0xff]
    %v847 = vld [vmem:[#allocation11 + $0x38] sm:$0xff]
    %v848 = vld [vmem:[#allocation11 + $0x40] sm:$0xff]
    %v849 = vld [vmem:[#allocation11 + $0x48] sm:$0xff]
    %v850 = vld [vmem:[#allocation11 + $0x50] sm:$0xff]
    %v851 = vld [vmem:[#allocation11 + $0x58] sm:$0xff]
    %v852 = vld [vmem:[#allocation11 + $0x60] sm:$0xff]
    %v853 = vld [vmem:[#allocation11 + $0x68] sm:$0xff]
    %v854 = vld [vmem:[#allocation11 + $0x70] sm:$0xff]
    %v855 = vld [vmem:[#allocation11 + $0x78] sm:$0xff]
    %v856 = vld [vmem:[#allocation13] sm:$0x1]
    %v858 = vlaneseq
    %v859 = vshrl.u32 %v858, 7
    %v860 = vsub.s32 0, %v859
    %v861 = vrot.slane %v856, %v860
    %863 = vmatprep.subr.mxu0 0.0
    %864 = vmatpush1.msra.mxu0 %v840
    %865 = vmatprep.subr.mxu0 0.0
    %866 = vmatpush1.msra.mxu0 %v841
    %867 = vmatprep.subr.mxu0 0.0
    %868 = vmatpush1.msra.mxu0 %v842
    %869 = vmatprep.subr.mxu0 0.0
    %870 = vmatpush1.msra.mxu0 %v843
    %871 = vmatprep.subr.mxu0 0.0
    %872 = vmatpush1.msra.mxu0 %v844
    %873 = vmatprep.subr.mxu0 0.0
    %874 = vmatpush1.msra.mxu0 %v845
    %875 = vmatprep.subr.mxu0 0.0
    %876 = vmatpush1.msra.mxu0 %v846
    %877 = vmatprep.subr.mxu0 0.0
    %878 = vmatpush1.msra.mxu0 %v847
    %879 = vmatprep.subr.mxu0 0.0
    %880 = vmatpush1.msra.mxu0 %v848
    %881 = vmatprep.subr.mxu0 0.0
    %882 = vmatpush1.msra.mxu0 %v849
    %883 = vmatprep.subr.mxu0 0.0
    %884 = vmatpush1.msra.mxu0 %v850
    %885 = vmatprep.subr.mxu0 0.0
    %886 = vmatpush1.msra.mxu0 %v851
    %887 = vmatprep.subr.mxu0 0.0
    %888 = vmatpush1.msra.mxu0 %v852
    %889 = vmatprep.subr.mxu0 0.0
    %890 = vmatpush1.msra.mxu0 %v853
    %891 = vmatprep.subr.mxu0 0.0
    %892 = vmatpush1.msra.mxu0 %v854
    %893 = vmatprep.subr.mxu0 0.0
    %894 = vmatpush1.msra.mxu0 %v855
    %895 = vmatprep.subr.mxu0 0.0
    %896 = vmatpush1.msra.mxu0 0.0
    %897 = vmatprep.subr.mxu0 0.0
    %898 = vmatpush1.msra.mxu0 0.0
    %899 = vmatprep.subr.mxu0 0.0
    %900 = vmatpush1.msra.mxu0 0.0
    %901 = vmatprep.subr.mxu0 0.0
    %902 = vmatpush1.msra.mxu0 0.0
    %903 = vmatprep.subr.mxu0 0.0
    %904 = vmatpush1.msra.mxu0 0.0
    %905 = vmatprep.subr.mxu0 0.0
    %906 = vmatpush1.msra.mxu0 0.0
    %907 = vmatprep.subr.mxu0 0.0
    %908 = vmatpush1.msra.mxu0 0.0
    %909 = vmatprep.subr.mxu0 0.0
    %910 = vmatpush1.msra.mxu0 0.0
    %911 = vmatprep.subr.mxu0 0.0
    %912 = vmatpush1.msra.mxu0 0.0
    %913 = vmatprep.subr.mxu0 0.0
    %914 = vmatpush1.msra.mxu0 0.0
    %915 = vmatprep.subr.mxu0 0.0
    %916 = vmatpush1.msra.mxu0 0.0
    %917 = vmatprep.subr.mxu0 0.0
    %918 = vmatpush1.msra.mxu0 0.0
    %919 = vmatprep.subr.mxu0 0.0
    %920 = vmatpush1.msra.mxu0 0.0
    %921 = vmatprep.subr.mxu0 0.0
    %922 = vmatpush1.msra.mxu0 0.0
    %923 = vmatprep.subr.mxu0 0.0
    %924 = vmatpush1.msra.mxu0 0.0
    %925 = vmatprep.subr.mxu0 0.0
    %926 = vmatpush1.msra.mxu0 0.0
    %927 = vmatprep.mubr.f32.mxu0 0.0
    %928 = vmatmul.mubr.f32.gmra.mrb[0].mxu0 %v839
    %v929 = vpop.f32.mrb[0].mxu0
    %v930 = vadd.f32 %v861, %v929
    %v931 = vpop.f32.mrb[0].mxu0
    %932 = vdwg.mxu0
    %933 = vst [vmem:[#allocation14] sm:$0xff] %v930
    // Predicated region
    $region58: #{tpu_custom_call.1} parent=1 // pred_check
      _
    $region59: #{tpu_custom_call.1} parent=1 // pred_check_branch
      %935 = sbr.rel (0) target = $region61
    $region60: #{tpu_custom_call.1} parent=1 // pred_region
      %s937 = ssub.s32 128, 128
      %938 = vsyncadd [#allocation4], %s937
      %s940 = sshll.u32 [#allocation14], 4
      %s941 = int_to_ptr.vmem [resolvable:$true] %s940
      %943 = dma.vmem_to_hbm [thread:$0]  %s941, 128, %s7, [#allocation4]
    $region61: #{tpu_custom_call.1} parent=1 // pred_fallthru
      _
    // Predicated region
    $region62: #{tpu_custom_call.1} parent=1 // pred_check
      _
    $region63: #{tpu_custom_call.1} parent=1 // pred_check_branch
      %945 = sbr.rel (0) target = $region65
    $region64: #{tpu_custom_call.1} parent=1 // pred_region
      %946 = dma.done [#allocation4], 128
    $region65: #{tpu_custom_call.1} parent=1 // pred_fallthru
      _
    %947 = vsyncpa [#allocation3], 1
    %948 = vsyncpa [#allocation6], 1
    %949 = vsyncpa [#allocation9], 1
    %950 = vsyncpa [#allocation12], 1
    %951 = vsyncpa [#allocation4], 1

// kernel: tpu_custom_call.1
$region0: #{tpu_custom_call.1}
  #allocation0 [shape = 'u32[]', space=smem, size = 0x4, offset = 0x4, fixed_abs, tag = 'smem constant byte address 0x4 - core index']
  #allocation1 [shape = 'u32[144,128]{1,0:T(1,128)}', space=vmem, size = 0x12000, scoped, tag = 'internal scratch']
  %s0 = inlined_call_operand.hbm [shape: f32[8,1536], index: 0, kind: input, shape index: {}]
  %s1 = inlined_call_operand.hbm [shape: f32[1536,128], index: 1, kind: input, shape index: {}]
  %s2 = inlined_call_operand.hbm [shape: f32[1,128], index: 2, kind: input, shape index: {}]
  %s3 = inlined_call_operand.hbm [shape: f32[128,128], index: 3, kind: input, shape index: {}]
  %s4 = inlined_call_operand.hbm [shape: f32[1,128], index: 4, kind: input, shape index: {}]
  %s5 = inlined_call_operand.hbm [shape: f32[128,128], index: 5, kind: input, shape index: {}]
  %s6 = inlined_call_operand.hbm [shape: f32[1,128], index: 6, kind: input, shape index: {}]
  %s7 = inlined_call_operand.hbm [shape: f32[8,128], index: 7, kind: output, shape index: {}]
  %s8 = sld [smem:[#allocation0]]
  $region66: #{tpu_custom_call.1} parent=0
    _
  %s10 = ssub.s32 1, %s8
  %s11 = scalar_select 0, %s10, %s8
  $region1: #{tpu_custom_call.1} parent=0
    #allocation2 [shape = 'u8[49152]{0}', space=vmem, size = 0xc000, scoped, tag = 'input window, operand 0, single buffered']
    #allocation3 [shape = 's32[1]{0}', space=sflag, size = 0x4, scoped, tag = 'scoped memory for tpu_custom_call.1']
    #allocation4 [shape = 's32[1]{0}', space=sflag, size = 0x4, scoped, tag = 'scoped memory for tpu_custom_call.1']
    #allocation5 [shape = 'u8[786432]{0}', space=vmem, size = 0xc0000, scoped, tag = 'input window, operand 1, single buffered']
    #allocation6 [shape = 's32[1]{0}', space=sflag, size = 0x4, scoped, tag = 'scoped memory for tpu_custom_call.1']
    #allocation7 [shape = 'u8[512]{0}', space=vmem, size = 0x400, scoped, tag = 'input window, operand 2, single buffered']
    #allocation8 [shape = 'u8[65536]{0}', space=vmem, size = 0x10000, scoped, tag = 'input window, operand 3, single buffered']
    #allocation9 [shape = 's32[1]{0}', space=sflag, size = 0x4, scoped, tag = 'scoped memory for tpu_custom_call.1']
    #allocation10 [shape = 'u8[512]{0}', space=vmem, size = 0x400, scoped, tag = 'input window, operand 4, single buffered']
    #allocation11 [shape = 'u8[65536]{0}', space=vmem, size = 0x10000, scoped, tag = 'input window, operand 5, single buffered']
    #allocation12 [shape = 's32[1]{0}', space=sflag, size = 0x4, scoped, tag = 'scoped memory for tpu_custom_call.1']
    #allocation13 [shape = 'u8[512]{0}', space=vmem, size = 0x400, scoped, tag = 'input window, operand 6, single buffered']
    #allocation14 [shape = 'u8[4096]{0}', space=vmem, size = 0x1000, scoped, tag = 'output window, operand 0, single buffered']
    %12 = vsyncpa [#allocation3], 0
    %13 = vsyncpa [#allocation6], 0
    %14 = vsyncpa [#allocation9], 0
    %15 = vsyncpa [#allocation12], 0
    %16 = vsyncpa [#allocation4], 0
    // Predicated region
    $region2: #{tpu_custom_call.1} parent=1 // pred_check
      _
    $region3: #{tpu_custom_call.1} parent=1 // pred_check_branch
      %18 = sbr.rel (0) target = $region5
    $region4: #{tpu_custom_call.1} parent=1 // pred_region
      %s20 = ssub.s32 1536, 1536
      %21 = vsyncadd [#allocation3], %s20
      %s23 = sshll.u32 [#allocation2], 4
      %s24 = int_to_ptr.vmem [resolvable:$true] %s23
      %26 = dma.hbm_to_vmem [thread:$0]  %s0, 1536, %s24, [#allocation3]
    $region5: #{tpu_custom_call.1} parent=1 // pred_fallthru
      _
    // Predicated region
    $region6: #{tpu_custom_call.1} parent=1 // pred_check
      _
    $region7: #{tpu_custom_call.1} parent=1 // pred_check_branch
      %28 = sbr.rel (0) target = $region9
    $region8: #{tpu_custom_call.1} parent=1 // pred_region
      %s30 = ssub.s32 24576, 24576
      %31 = vsyncadd [#allocation6], %s30
      %s32 = sshll.u32 [#allocation5], 4
      %s33 = int_to_ptr.vmem [resolvable:$true] %s32
      %38 = dma.hbm_to_vmem [thread:$0]  %s1, 24576, %s33, [#allocation6], 128, 128, 8
    $region9: #{tpu_custom_call.1} parent=1 // pred_fallthru
      _
    // Predicated region
    $region10: #{tpu_custom_call.1} parent=1 // pred_check
      _
    $region11: #{tpu_custom_call.1} parent=1 // pred_check_branch
      %40 = sbr.rel (0) target = $region13
    $region12: #{tpu_custom_call.1} parent=1 // pred_region
      %s42 = ssub.s32 16, 16
      %43 = vsyncadd [#allocation6], %s42
      %s45 = sshll.u32 [#allocation7], 4
      %s46 = int_to_ptr.vmem [resolvable:$true] %s45
      %48 = dma.hbm_to_vmem [thread:$0]  %s2, 16, %s46, [#allocation6]
    $region13: #{tpu_custom_call.1} parent=1 // pred_fallthru
      _
    // Predicated region
    $region14: #{tpu_custom_call.1} parent=1 // pred_check
      _
    $region15: #{tpu_custom_call.1} parent=1 // pred_check_branch
      %50 = sbr.rel (0) target = $region17
    $region16: #{tpu_custom_call.1} parent=1 // pred_region
      %s52 = ssub.s32 2048, 2048
      %53 = vsyncadd [#allocation9], %s52
      %s54 = sshll.u32 [#allocation8], 4
      %s55 = int_to_ptr.vmem [resolvable:$true] %s54
      %60 = dma.hbm_to_vmem [thread:$0]  %s3, 2048, %s55, [#allocation9], 128, 128, 8
    $region17: #{tpu_custom_call.1} parent=1 // pred_fallthru
      _
    // Predicated region
    $region18: #{tpu_custom_call.1} parent=1 // pred_check
      _
    $region19: #{tpu_custom_call.1} parent=1 // pred_check_branch
      %62 = sbr.rel (0) target = $region21
    $region20: #{tpu_custom_call.1} parent=1 // pred_region
      %s64 = ssub.s32 16, 16
      %65 = vsyncadd [#allocation9], %s64
      %s67 = sshll.u32 [#allocation10], 4
      %s68 = int_to_ptr.vmem [resolvable:$true] %s67
      %70 = dma.hbm_to_vmem [thread:$0]  %s4, 16, %s68, [#allocation9]
    $region21: #{tpu_custom_call.1} parent=1 // pred_fallthru
      _
    // Predicated region
    $region22: #{tpu_custom_call.1} parent=1 // pred_check
      _
    $region23: #{tpu_custom_call.1} parent=1 // pred_check_branch
      %72 = sbr.rel (0) target = $region25
    $region24: #{tpu_custom_call.1} parent=1 // pred_region
      %s74 = ssub.s32 2048, 2048
      %75 = vsyncadd [#allocation12], %s74
      %s76 = sshll.u32 [#allocation11], 4
      %s77 = int_to_ptr.vmem [resolvable:$true] %s76
      %82 = dma.hbm_to_vmem [thread:$0]  %s5, 2048, %s77, [#allocation12], 128, 128, 8
    $region25: #{tpu_custom_call.1} parent=1 // pred_fallthru
      _
    // Predicated region
    $region26: #{tpu_custom_call.1} parent=1 // pred_check
      _
    $region27: #{tpu_custom_call.1} parent=1 // pred_check_branch
      %84 = sbr.rel (0) target = $region29
    $region28: #{tpu_custom_call.1} parent=1 // pred_region
      %s86 = ssub.s32 16, 16
      %87 = vsyncadd [#allocation12], %s86
      %s89 = sshll.u32 [#allocation13], 4
      %s90 = int_to_ptr.vmem [resolvable:$true] %s89
      %92 = dma.hbm_to_vmem [thread:$0]  %s6, 16, %s90, [#allocation12]
    $region29: #{tpu_custom_call.1} parent=1 // pred_fallthru
      _
    // Predicated region
    $region30: #{tpu_custom_call.1} parent=1 // pred_check
      _
    $region31: #{tpu_custom_call.1} parent=1 // pred_check_branch
      %94 = sbr.rel (0) target = $region33
    $region32: #{tpu_custom_call.1} parent=1 // pred_region
      %95 = dma.done [#allocation3], 1536
    $region33: #{tpu_custom_call.1} parent=1 // pred_fallthru
      _
    // Predicated region
    $region34: #{tpu_custom_call.1} parent=1 // pred_check
      _
    $region35: #{tpu_custom_call.1} parent=1 // pred_check_branch
      %97 = sbr.rel (0) target = $region37
    $region36: #{tpu_custom_call.1} parent=1 // pred_region
      %98 = dma.done [#allocation6], 24576
    $region37: #{tpu_custom_call.1} parent=1 // pred_fallthru
      _
    // Predicated region
    $region38: #{tpu_custom_call.1} parent=1 // pred_check
      _
    $region39: #{tpu_custom_call.1} parent=1 // pred_check_branch
      %100 = sbr.rel (0) target = $region41
    $region40: #{tpu_custom_call.1} parent=1 // pred_region
      %101 = dma.done [#allocation6], 16
    $region41: #{tpu_custom_call.1} parent=1 // pred_fallthru
      _
    // Predicated region
    $region42: #{tpu_custom_call.1} parent=1 // pred_check
      _
    $region43: #{tpu_custom_call.1} parent=1 // pred_check_branch
      %103 = sbr.rel (0) target = $region45
    $region44: #{tpu_custom_call.1} parent=1 // pred_region
      %104 = dma.done [#allocation9], 2048
    $region45: #{tpu_custom_call.1} parent=1 // pred_fallthru
      _
    // Predicated region
    $region46: #{tpu_custom_call.1} parent=1 // pred_check
      _
    $region47: #{tpu_custom_call.1} parent=1 // pred_check_branch
      %106 = sbr.rel (0) target = $region49
    $region48: #{tpu_custom_call.1} parent=1 // pred_region
      %107 = dma.done [#allocation9], 16
    $region49: #{tpu_custom_call.1} parent=1 // pred_fallthru
      _
    // Predicated region
    $region50: #{tpu_custom_call.1} parent=1 // pred_check
      _
    $region51: #{tpu_custom_call.1} parent=1 // pred_check_branch
      %109 = sbr.rel (0) target = $region53
    $region52: #{tpu_custom_call.1} parent=1 // pred_region
      %110 = dma.done [#allocation12], 2048
    $region53: #{tpu_custom_call.1} parent=1 // pred_fallthru
      _
    // Predicated region
    $region54: #{tpu_custom_call.1} parent=1 // pred_check
      _
    $region55: #{tpu_custom_call.1} parent=1 // pred_check_branch
      %112 = sbr.rel (0) target = $region57
    $region56: #{tpu_custom_call.1} parent=1 // pred_region
      %113 = dma.done [#allocation12], 16
    $region57: #{tpu_custom_call.1} parent=1 // pred_fallthru
      _
    %v114 = vld [vmem:[#allocation2] sm:$0xff]
    %v115 = vld [vmem:[#allocation2 + $0x8] sm:$0xff]
    %v116 = vld [vmem:[#allocation2 + $0x10] sm:$0xff]
    %v117 = vld [vmem:[#allocation2 + $0x18] sm:$0xff]
    %v118 = vld [vmem:[#allocation2 + $0x20] sm:$0xff]
    %v119 = vld [vmem:[#allocation2 + $0x28] sm:$0xff]
    %v120 = vld [vmem:[#allocation2 + $0x30] sm:$0xff]
    %v121 = vld [vmem:[#allocation2 + $0x38] sm:$0xff]
    %v122 = vld [vmem:[#allocation2 + $0x40] sm:$0xff]
    %v123 = vld [vmem:[#allocation2 + $0x48] sm:$0xff]
    %v124 = vld [vmem:[#allocation2 + $0x50] sm:$0xff]
    %v125 = vld [vmem:[#allocation2 + $0x58] sm:$0xff]
    %v126 = vld [vmem:[#allocation5] sm:$0xff]
    %v127 = vld [vmem:[#allocation5 + $0x8] sm:$0xff]
    %v128 = vld [vmem:[#allocation5 + $0x10] sm:$0xff]
    %v129 = vld [vmem:[#allocation5 + $0x18] sm:$0xff]
    %v130 = vld [vmem:[#allocation5 + $0x20] sm:$0xff]
    %v131 = vld [vmem:[#allocation5 + $0x28] sm:$0xff]
    %v132 = vld [vmem:[#allocation5 + $0x30] sm:$0xff]
    %v133 = vld [vmem:[#allocation5 + $0x38] sm:$0xff]
    %v134 = vld [vmem:[#allocation5 + $0x40] sm:$0xff]
    %v135 = vld [vmem:[#allocation5 + $0x48] sm:$0xff]
    %v136 = vld [vmem:[#allocation5 + $0x50] sm:$0xff]
    %v137 = vld [vmem:[#allocation5 + $0x58] sm:$0xff]
    %v138 = vld [vmem:[#allocation5 + $0x60] sm:$0xff]
    %v139 = vld [vmem:[#allocation5 + $0x68] sm:$0xff]
    %v140 = vld [vmem:[#allocation5 + $0x70] sm:$0xff]
    %v141 = vld [vmem:[#allocation5 + $0x78] sm:$0xff]
    %v142 = vld [vmem:[#allocation5 + $0x80] sm:$0xff]
    %v143 = vld [vmem:[#allocation5 + $0x88] sm:$0xff]
    %v144 = vld [vmem:[#allocation5 + $0x90] sm:$0xff]
    %v145 = vld [vmem:[#allocation5 + $0x98] sm:$0xff]
    %v146 = vld [vmem:[#allocation5 + $0xa0] sm:$0xff]
    %v147 = vld [vmem:[#allocation5 + $0xa8] sm:$0xff]
    %v148 = vld [vmem:[#allocation5 + $0xb0] sm:$0xff]
    %v149 = vld [vmem:[#allocation5 + $0xb8] sm:$0xff]
    %v150 = vld [vmem:[#allocation5 + $0xc0] sm:$0xff]
    %v151 = vld [vmem:[#allocation5 + $0xc8] sm:$0xff]
    %v152 = vld [vmem:[#allocation5 + $0xd0] sm:$0xff]
    %v153 = vld [vmem:[#allocation5 + $0xd8] sm:$0xff]
    %v154 = vld [vmem:[#allocation5 + $0xe0] sm:$0xff]
    %v155 = vld [vmem:[#allocation5 + $0xe8] sm:$0xff]
    %v156 = vld [vmem:[#allocation5 + $0xf0] sm:$0xff]
    %v157 = vld [vmem:[#allocation5 + $0xf8] sm:$0xff]
    %v158 = vld [vmem:[#allocation5 + $0x100] sm:$0xff]
    %v159 = vld [vmem:[#allocation5 + $0x108] sm:$0xff]
    %v160 = vld [vmem:[#allocation5 + $0x110] sm:$0xff]
    %v161 = vld [vmem:[#allocation5 + $0x118] sm:$0xff]
    %v162 = vld [vmem:[#allocation5 + $0x120] sm:$0xff]
    %v163 = vld [vmem:[#allocation5 + $0x128] sm:$0xff]
    %v164 = vld [vmem:[#allocation5 + $0x130] sm:$0xff]
    %v165 = vld [vmem:[#allocation5 + $0x138] sm:$0xff]
    %v166 = vld [vmem:[#allocation5 + $0x140] sm:$0xff]
    %v167 = vld [vmem:[#allocation5 + $0x148] sm:$0xff]
    %v168 = vld [vmem:[#allocation5 + $0x150] sm:$0xff]
    %v169 = vld [vmem:[#allocation5 + $0x158] sm:$0xff]
    %v170 = vld [vmem:[#allocation5 + $0x160] sm:$0xff]
    %v171 = vld [vmem:[#allocation5 + $0x168] sm:$0xff]
    %v172 = vld [vmem:[#allocation5 + $0x170] sm:$0xff]
    %v173 = vld [vmem:[#allocation5 + $0x178] sm:$0xff]
    %v174 = vld [vmem:[#allocation5 + $0x180] sm:$0xff]
    %v175 = vld [vmem:[#allocation5 + $0x188] sm:$0xff]
    %v176 = vld [vmem:[#allocation5 + $0x190] sm:$0xff]
    %v177 = vld [vmem:[#allocation5 + $0x198] sm:$0xff]
    %v178 = vld [vmem:[#allocation5 + $0x1a0] sm:$0xff]
    %v179 = vld [vmem:[#allocation5 + $0x1a8] sm:$0xff]
    %v180 = vld [vmem:[#allocation5 + $0x1b0] sm:$0xff]
    %v181 = vld [vmem:[#allocation5 + $0x1b8] sm:$0xff]
    %v182 = vld [vmem:[#allocation5 + $0x1c0] sm:$0xff]
    %v183 = vld [vmem:[#allocation5 + $0x1c8] sm:$0xff]
    %v184 = vld [vmem:[#allocation5 + $0x1d0] sm:$0xff]
    %v185 = vld [vmem:[#allocation5 + $0x1d8] sm:$0xff]
    %v186 = vld [vmem:[#allocation5 + $0x1e0] sm:$0xff]
    %v187 = vld [vmem:[#allocation5 + $0x1e8] sm:$0xff]
    %v188 = vld [vmem:[#allocation5 + $0x1f0] sm:$0xff]
    %v189 = vld [vmem:[#allocation5 + $0x1f8] sm:$0xff]
    %v190 = vld [vmem:[#allocation5 + $0x200] sm:$0xff]
    %v191 = vld [vmem:[#allocation5 + $0x208] sm:$0xff]
    %v192 = vld [vmem:[#allocation5 + $0x210] sm:$0xff]
    %v193 = vld [vmem:[#allocation5 + $0x218] sm:$0xff]
    %v194 = vld [vmem:[#allocation5 + $0x220] sm:$0xff]
    %v195 = vld [vmem:[#allocation5 + $0x228] sm:$0xff]
    %v196 = vld [vmem:[#allocation5 + $0x230] sm:$0xff]
    %v197 = vld [vmem:[#allocation5 + $0x238] sm:$0xff]
    %v198 = vld [vmem:[#allocation5 + $0x240] sm:$0xff]
    %v199 = vld [vmem:[#allocation5 + $0x248] sm:$0xff]
    %v200 = vld [vmem:[#allocation5 + $0x250] sm:$0xff]
    %v201 = vld [vmem:[#allocation5 + $0x258] sm:$0xff]
    %v202 = vld [vmem:[#allocation5 + $0x260] sm:$0xff]
    %v203 = vld [vmem:[#allocation5 + $0x268] sm:$0xff]
    %v204 = vld [vmem:[#allocation5 + $0x270] sm:$0xff]
    %v205 = vld [vmem:[#allocation5 + $0x278] sm:$0xff]
    %v206 = vld [vmem:[#allocation5 + $0x280] sm:$0xff]
    %v207 = vld [vmem:[#allocation5 + $0x288] sm:$0xff]
    %v208 = vld [vmem:[#allocation5 + $0x290] sm:$0xff]
    %v209 = vld [vmem:[#allocation5 + $0x298] sm:$0xff]
    %v210 = vld [vmem:[#allocation5 + $0x2a0] sm:$0xff]
    %v211 = vld [vmem:[#allocation5 + $0x2a8] sm:$0xff]
    %v212 = vld [vmem:[#allocation5 + $0x2b0] sm:$0xff]
    %v213 = vld [vmem:[#allocation5 + $0x2b8] sm:$0xff]
    %v214 = vld [vmem:[#allocation5 + $0x2c0] sm:$0xff]
    %v215 = vld [vmem:[#allocation5 + $0x2c8] sm:$0xff]
    %v216 = vld [vmem:[#allocation5 + $0x2d0] sm:$0xff]
    %v217 = vld [vmem:[#allocation5 + $0x2d8] sm:$0xff]
    %v218 = vld [vmem:[#allocation5 + $0x2e0] sm:$0xff]
    %v219 = vld [vmem:[#allocation5 + $0x2e8] sm:$0xff]
    %v220 = vld [vmem:[#allocation5 + $0x2f0] sm:$0xff]
    %v221 = vld [vmem:[#allocation5 + $0x2f8] sm:$0xff]
    %v222 = vld [vmem:[#allocation5 + $0x300] sm:$0xff]
    %v223 = vld [vmem:[#allocation5 + $0x308] sm:$0xff]
    %v224 = vld [vmem:[#allocation5 + $0x310] sm:$0xff]
    %v225 = vld [vmem:[#allocation5 + $0x318] sm:$0xff]
    %v226 = vld [vmem:[#allocation5 + $0x320] sm:$0xff]
    %v227 = vld [vmem:[#allocation5 + $0x328] sm:$0xff]
    %v228 = vld [vmem:[#allocation5 + $0x330] sm:$0xff]
    %v229 = vld [vmem:[#allocation5 + $0x338] sm:$0xff]
    %v230 = vld [vmem:[#allocation5 + $0x340] sm:$0xff]
    %v231 = vld [vmem:[#allocation5 + $0x348] sm:$0xff]
    %v232 = vld [vmem:[#allocation5 + $0x350] sm:$0xff]
    %v233 = vld [vmem:[#allocation5 + $0x358] sm:$0xff]
    %v234 = vld [vmem:[#allocation5 + $0x360] sm:$0xff]
    %v235 = vld [vmem:[#allocation5 + $0x368] sm:$0xff]
    %v236 = vld [vmem:[#allocation5 + $0x370] sm:$0xff]
    %v237 = vld [vmem:[#allocation5 + $0x378] sm:$0xff]
    %v238 = vld [vmem:[#allocation5 + $0x380] sm:$0xff]
    %v239 = vld [vmem:[#allocation5 + $0x388] sm:$0xff]
    %v240 = vld [vmem:[#allocation5 + $0x390] sm:$0xff]
    %v241 = vld [vmem:[#allocation5 + $0x398] sm:$0xff]
    %v242 = vld [vmem:[#allocation5 + $0x3a0] sm:$0xff]
    %v243 = vld [vmem:[#allocation5 + $0x3a8] sm:$0xff]
    %v244 = vld [vmem:[#allocation5 + $0x3b0] sm:$0xff]
    %v245 = vld [vmem:[#allocation5 + $0x3b8] sm:$0xff]
    %v246 = vld [vmem:[#allocation5 + $0x3c0] sm:$0xff]
    %v247 = vld [vmem:[#allocation5 + $0x3c8] sm:$0xff]
    %v248 = vld [vmem:[#allocation5 + $0x3d0] sm:$0xff]
    %v249 = vld [vmem:[#allocation5 + $0x3d8] sm:$0xff]
    %v250 = vld [vmem:[#allocation5 + $0x3e0] sm:$0xff]
    %v251 = vld [vmem:[#allocation5 + $0x3e8] sm:$0xff]
    %v252 = vld [vmem:[#allocation5 + $0x3f0] sm:$0xff]
    %v253 = vld [vmem:[#allocation5 + $0x3f8] sm:$0xff]
    %v254 = vld [vmem:[#allocation5 + $0x400] sm:$0xff]
    %v255 = vld [vmem:[#allocation5 + $0x408] sm:$0xff]
    %v256 = vld [vmem:[#allocation5 + $0x410] sm:$0xff]
    %v257 = vld [vmem:[#allocation5 + $0x418] sm:$0xff]
    %v258 = vld [vmem:[#allocation5 + $0x420] sm:$0xff]
    %v259 = vld [vmem:[#allocation5 + $0x428] sm:$0xff]
    %v260 = vld [vmem:[#allocation5 + $0x430] sm:$0xff]
    %v261 = vld [vmem:[#allocation5 + $0x438] sm:$0xff]
    %v262 = vld [vmem:[#allocation5 + $0x440] sm:$0xff]
    %v263 = vld [vmem:[#allocation5 + $0x448] sm:$0xff]
    %v264 = vld [vmem:[#allocation5 + $0x450] sm:$0xff]
    %v265 = vld [vmem:[#allocation5 + $0x458] sm:$0xff]
    %v266 = vld [vmem:[#allocation5 + $0x460] sm:$0xff]
    %v267 = vld [vmem:[#allocation5 + $0x468] sm:$0xff]
    %v268 = vld [vmem:[#allocation5 + $0x470] sm:$0xff]
    %v269 = vld [vmem:[#allocation5 + $0x478] sm:$0xff]
    %v270 = vld [vmem:[#allocation5 + $0x480] sm:$0xff]
    %v271 = vld [vmem:[#allocation5 + $0x488] sm:$0xff]
    %v272 = vld [vmem:[#allocation5 + $0x490] sm:$0xff]
    %v273 = vld [vmem:[#allocation5 + $0x498] sm:$0xff]
    %v274 = vld [vmem:[#allocation5 + $0x4a0] sm:$0xff]
    %v275 = vld [vmem:[#allocation5 + $0x4a8] sm:$0xff]
    %v276 = vld [vmem:[#allocation5 + $0x4b0] sm:$0xff]
    %v277 = vld [vmem:[#allocation5 + $0x4b8] sm:$0xff]
    %v278 = vld [vmem:[#allocation5 + $0x4c0] sm:$0xff]
    %v279 = vld [vmem:[#allocation5 + $0x4c8] sm:$0xff]
    %v280 = vld [vmem:[#allocation5 + $0x4d0] sm:$0xff]
    %v281 = vld [vmem:[#allocation5 + $0x4d8] sm:$0xff]
    %v282 = vld [vmem:[#allocation5 + $0x4e0] sm:$0xff]
    %v283 = vld [vmem:[#allocation5 + $0x4e8] sm:$0xff]
    %v284 = vld [vmem:[#allocation5 + $0x4f0] sm:$0xff]
    %v285 = vld [vmem:[#allocation5 + $0x4f8] sm:$0xff]
    %v286 = vld [vmem:[#allocation5 + $0x500] sm:$0xff]
    %v287 = vld [vmem:[#allocation5 + $0x508] sm:$0xff]
    %v288 = vld [vmem:[#allocation5 + $0x510] sm:$0xff]
    %v289 = vld [vmem:[#allocation5 + $0x518] sm:$0xff]
    %v290 = vld [vmem:[#allocation5 + $0x520] sm:$0xff]
    %v291 = vld [vmem:[#allocation5 + $0x528] sm:$0xff]
    %v292 = vld [vmem:[#allocation5 + $0x530] sm:$0xff]
    %v293 = vld [vmem:[#allocation5 + $0x538] sm:$0xff]
    %v294 = vld [vmem:[#allocation5 + $0x540] sm:$0xff]
    %v295 = vld [vmem:[#allocation5 + $0x548] sm:$0xff]
    %v296 = vld [vmem:[#allocation5 + $0x550] sm:$0xff]
    %v297 = vld [vmem:[#allocation5 + $0x558] sm:$0xff]
    %v298 = vld [vmem:[#allocation5 + $0x560] sm:$0xff]
    %v299 = vld [vmem:[#allocation5 + $0x568] sm:$0xff]
    %v300 = vld [vmem:[#allocation5 + $0x570] sm:$0xff]
    %v301 = vld [vmem:[#allocation5 + $0x578] sm:$0xff]
    %v302 = vld [vmem:[#allocation5 + $0x580] sm:$0xff]
    %v303 = vld [vmem:[#allocation5 + $0x588] sm:$0xff]
    %v304 = vld [vmem:[#allocation5 + $0x590] sm:$0xff]
    %v305 = vld [vmem:[#allocation5 + $0x598] sm:$0xff]
    %v306 = vld [vmem:[#allocation5 + $0x5a0] sm:$0xff]
    %v307 = vld [vmem:[#allocation5 + $0x5a8] sm:$0xff]
    %v308 = vld [vmem:[#allocation5 + $0x5b0] sm:$0xff]
    %v309 = vld [vmem:[#allocation5 + $0x5b8] sm:$0xff]
    %v310 = vld [vmem:[#allocation5 + $0x5c0] sm:$0xff]
    %v311 = vld [vmem:[#allocation5 + $0x5c8] sm:$0xff]
    %v312 = vld [vmem:[#allocation5 + $0x5d0] sm:$0xff]
    %v313 = vld [vmem:[#allocation5 + $0x5d8] sm:$0xff]
    %v314 = vld [vmem:[#allocation5 + $0x5e0] sm:$0xff]
    %v315 = vld [vmem:[#allocation5 + $0x5e8] sm:$0xff]
    %v316 = vld [vmem:[#allocation5 + $0x5f0] sm:$0xff]
    %v317 = vld [vmem:[#allocation5 + $0x5f8] sm:$0xff]
    %v318 = vld [vmem:[#allocation7] sm:$0x1]
    %v320 = vlaneseq
    %v321 = vshrl.u32 %v320, 7
    %v322 = vsub.s32 0, %v321
    %v323 = vrot.slane %v318, %v322
    %325 = vmatprep.subr.mxu0 0.0
    %326 = vmatpush1.msra.mxu0 %v126
    %327 = vmatprep.subr.mxu0 0.0
    %328 = vmatpush1.msra.mxu0 %v127
    %329 = vmatprep.subr.mxu0 0.0
    %330 = vmatpush1.msra.mxu0 %v128
    %331 = vmatprep.subr.mxu0 0.0
    %332 = vmatpush1.msra.mxu0 %v129
    %333 = vmatprep.subr.mxu0 0.0
    %334 = vmatpush1.msra.mxu0 %v130
    %335 = vmatprep.subr.mxu0 0.0
    %336 = vmatpush1.msra.mxu0 %v131
    %337 = vmatprep.subr.mxu0 0.0
    %338 = vmatpush1.msra.mxu0 %v132
    %339 = vmatprep.subr.mxu0 0.0
    %340 = vmatpush1.msra.mxu0 %v133
    %341 = vmatprep.subr.mxu0 0.0
    %342 = vmatpush1.msra.mxu0 %v134
    %343 = vmatprep.subr.mxu0 0.0
    %344 = vmatpush1.msra.mxu0 %v135
    %345 = vmatprep.subr.mxu0 0.0
    %346 = vmatpush1.msra.mxu0 %v136
    %347 = vmatprep.subr.mxu0 0.0
    %348 = vmatpush1.msra.mxu0 %v137
    %349 = vmatprep.subr.mxu0 0.0
    %350 = vmatpush1.msra.mxu0 %v138
    %351 = vmatprep.subr.mxu0 0.0
    %352 = vmatpush1.msra.mxu0 %v139
    %353 = vmatprep.subr.mxu0 0.0
    %354 = vmatpush1.msra.mxu0 %v140
    %355 = vmatprep.subr.mxu0 0.0
    %356 = vmatpush1.msra.mxu0 %v141
    %357 = vmatprep.subr.mxu0 0.0
    %358 = vmatpush1.msra.mxu0 %v142
    %359 = vmatprep.subr.mxu0 0.0
    %360 = vmatpush1.msra.mxu0 %v143
    %361 = vmatprep.subr.mxu0 0.0
    %362 = vmatpush1.msra.mxu0 %v144
    %363 = vmatprep.subr.mxu0 0.0
    %364 = vmatpush1.msra.mxu0 %v145
    %365 = vmatprep.subr.mxu0 0.0
    %366 = vmatpush1.msra.mxu0 %v146
    %367 = vmatprep.subr.mxu0 0.0
    %368 = vmatpush1.msra.mxu0 %v147
    %369 = vmatprep.subr.mxu0 0.0
    %370 = vmatpush1.msra.mxu0 %v148
    %371 = vmatprep.subr.mxu0 0.0
    %372 = vmatpush1.msra.mxu0 %v149
    %373 = vmatprep.subr.mxu0 0.0
    %374 = vmatpush1.msra.mxu0 %v150
    %375 = vmatprep.subr.mxu0 0.0
    %376 = vmatpush1.msra.mxu0 %v151
    %377 = vmatprep.subr.mxu0 0.0
    %378 = vmatpush1.msra.mxu0 %v152
    %379 = vmatprep.subr.mxu0 0.0
    %380 = vmatpush1.msra.mxu0 %v153
    %381 = vmatprep.subr.mxu0 0.0
    %382 = vmatpush1.msra.mxu0 %v154
    %383 = vmatprep.subr.mxu0 0.0
    %384 = vmatpush1.msra.mxu0 %v155
    %385 = vmatprep.subr.mxu0 0.0
    %386 = vmatpush1.msra.mxu0 %v156
    %387 = vmatprep.subr.mxu0 0.0
    %388 = vmatpush1.msra.mxu0 %v157
    %389 = vmatprep.mubr.f32.mxu0 %v115
    %390 = vmatmul.mubr.f32.gmra.mrb[0].mxu0 %v114
    %v391 = vpop.f32.mrb[0].mxu0
    %v392 = vadd.f32 %v323, %v391
    %v393 = vpop.f32.mrb[0].mxu0
    %394 = vdwg.mxu0
    %395 = vmatprep.subr.mxu0 0.0
    %396 = vmatpush1.msra.mxu0 %v158
    %397 = vmatprep.subr.mxu0 0.0
    %398 = vmatpush1.msra.mxu0 %v159
    %399 = vmatprep.subr.mxu0 0.0
    %400 = vmatpush1.msra.mxu0 %v160
    %401 = vmatprep.subr.mxu0 0.0
    %402 = vmatpush1.msra.mxu0 %v161
    %403 = vmatprep.subr.mxu0 0.0
    %404 = vmatpush1.msra.mxu0 %v162
    %405 = vmatprep.subr.mxu0 0.0
    %406 = vmatpush1.msra.mxu0 %v163
    %407 = vmatprep.subr.mxu0 0.0
    %408 = vmatpush1.msra.mxu0 %v164
    %409 = vmatprep.subr.mxu0 0.0
    %410 = vmatpush1.msra.mxu0 %v165
    %411 = vmatprep.subr.mxu0 0.0
    %412 = vmatpush1.msra.mxu0 %v166
    %413 = vmatprep.subr.mxu0 0.0
    %414 = vmatpush1.msra.mxu0 %v167
    %415 = vmatprep.subr.mxu0 0.0
    %416 = vmatpush1.msra.mxu0 %v168
    %417 = vmatprep.subr.mxu0 0.0
    %418 = vmatpush1.msra.mxu0 %v169
    %419 = vmatprep.subr.mxu0 0.0
    %420 = vmatpush1.msra.mxu0 %v170
    %421 = vmatprep.subr.mxu0 0.0
    %422 = vmatpush1.msra.mxu0 %v171
    %423 = vmatprep.subr.mxu0 0.0
    %424 = vmatpush1.msra.mxu0 %v172
    %425 = vmatprep.subr.mxu0 0.0
    %426 = vmatpush1.msra.mxu0 %v173
    %427 = vmatprep.subr.mxu0 0.0
    %428 = vmatpush1.msra.mxu0 %v174
    %429 = vmatprep.subr.mxu0 0.0
    %430 = vmatpush1.msra.mxu0 %v175
    %431 = vmatprep.subr.mxu0 0.0
    %432 = vmatpush1.msra.mxu0 %v176
    %433 = vmatprep.subr.mxu0 0.0
    %434 = vmatpush1.msra.mxu0 %v177
    %435 = vmatprep.subr.mxu0 0.0
    %436 = vmatpush1.msra.mxu0 %v178
    %437 = vmatprep.subr.mxu0 0.0
    %438 = vmatpush1.msra.mxu0 %v179
    %439 = vmatprep.subr.mxu0 0.0
    %440 = vmatpush1.msra.mxu0 %v180
    %441 = vmatprep.subr.mxu0 0.0
    %442 = vmatpush1.msra.mxu0 %v181
    %443 = vmatprep.subr.mxu0 0.0
    %444 = vmatpush1.msra.mxu0 %v182
    %445 = vmatprep.subr.mxu0 0.0
    %446 = vmatpush1.msra.mxu0 %v183
    %447 = vmatprep.subr.mxu0 0.0
    %448 = vmatpush1.msra.mxu0 %v184
    %449 = vmatprep.subr.mxu0 0.0
    %450 = vmatpush1.msra.mxu0 %v185
    %451 = vmatprep.subr.mxu0 0.0
    %452 = vmatpush1.msra.mxu0 %v186
    %453 = vmatprep.subr.mxu0 0.0
    %454 = vmatpush1.msra.mxu0 %v187
    %455 = vmatprep.subr.mxu0 0.0
    %456 = vmatpush1.msra.mxu0 %v188
    %457 = vmatprep.subr.mxu0 0.0
    %458 = vmatpush1.msra.mxu0 %v189
    %459 = vmatprep.mubr.f32.mxu0 %v117
    %460 = vmatmul.mubr.f32.gmra.mrb[0].mxu0 %v116
    %v461 = vpop.f32.mrb[0].mxu0
    %v462 = vadd.f32 %v392, %v461
    %v463 = vpop.f32.mrb[0].mxu0
    %464 = vdwg.mxu0
    %465 = vmatprep.subr.mxu0 0.0
    %466 = vmatpush1.msra.mxu0 %v190
    %467 = vmatprep.subr.mxu0 0.0
    %468 = vmatpush1.msra.mxu0 %v191
    %469 = vmatprep.subr.mxu0 0.0
    %470 = vmatpush1.msra.mxu0 %v192
    %471 = vmatprep.subr.mxu0 0.0
    %472 = vmatpush1.msra.mxu0 %v193
    %473 = vmatprep.subr.mxu0 0.0
    %474 = vmatpush1.msra.mxu0 %v194
    %475 = vmatprep.subr.mxu0 0.0
    %476 = vmatpush1.msra.mxu0 %v195
    %477 = vmatprep.subr.mxu0 0.0
    %478 = vmatpush1.msra.mxu0 %v196
    %479 = vmatprep.subr.mxu0 0.0
    %480 = vmatpush1.msra.mxu0 %v197
    %481 = vmatprep.subr.mxu0 0.0
    %482 = vmatpush1.msra.mxu0 %v198
    %483 = vmatprep.subr.mxu0 0.0
    %484 = vmatpush1.msra.mxu0 %v199
    %485 = vmatprep.subr.mxu0 0.0
    %486 = vmatpush1.msra.mxu0 %v200
    %487 = vmatprep.subr.mxu0 0.0
    %488 = vmatpush1.msra.mxu0 %v201
    %489 = vmatprep.subr.mxu0 0.0
    %490 = vmatpush1.msra.mxu0 %v202
    %491 = vmatprep.subr.mxu0 0.0
    %492 = vmatpush1.msra.mxu0 %v203
    %493 = vmatprep.subr.mxu0 0.0
    %494 = vmatpush1.msra.mxu0 %v204
    %495 = vmatprep.subr.mxu0 0.0
    %496 = vmatpush1.msra.mxu0 %v205
    %497 = vmatprep.subr.mxu0 0.0
    %498 = vmatpush1.msra.mxu0 %v206
    %499 = vmatprep.subr.mxu0 0.0
    %500 = vmatpush1.msra.mxu0 %v207
    %501 = vmatprep.subr.mxu0 0.0
    %502 = vmatpush1.msra.mxu0 %v208
    %503 = vmatprep.subr.mxu0 0.0
    %504 = vmatpush1.msra.mxu0 %v209
    %505 = vmatprep.subr.mxu0 0.0
    %506 = vmatpush1.msra.mxu0 %v210
    %507 = vmatprep.subr.mxu0 0.0
    %508 = vmatpush1.msra.mxu0 %v211
    %509 = vmatprep.subr.mxu0 0.0
    %510 = vmatpush1.msra.mxu0 %v212
    %511 = vmatprep.subr.mxu0 0.0
    %512 = vmatpush1.msra.mxu0 %v213
    %513 = vmatprep.subr.mxu0 0.0
    %514 = vmatpush1.msra.mxu0 %v214
    %515 = vmatprep.subr.mxu0 0.0
    %516 = vmatpush1.msra.mxu0 %v215
    %517 = vmatprep.subr.mxu0 0.0
    %518 = vmatpush1.msra.mxu0 %v216
    %519 = vmatprep.subr.mxu0 0.0
    %520 = vmatpush1.msra.mxu0 %v217
    %521 = vmatprep.subr.mxu0 0.0
    %522 = vmatpush1.msra.mxu0 %v218
    %523 = vmatprep.subr.mxu0 0.0
    %524 = vmatpush1.msra.mxu0 %v219
    %525 = vmatprep.subr.mxu0 0.0
    %526 = vmatpush1.msra.mxu0 %v220
    %527 = vmatprep.subr.mxu0 0.0
    %528 = vmatpush1.msra.mxu0 %v221
    %529 = vmatprep.mubr.f32.mxu0 %v119
    %530 = vmatmul.mubr.f32.gmra.mrb[0].mxu0 %v118
    %v531 = vpop.f32.mrb[0].mxu0
    %v532 = vadd.f32 %v462, %v531
    %v533 = vpop.f32.mrb[0].mxu0
    %534 = vdwg.mxu0
    %535 = vmatprep.subr.mxu0 0.0
    %536 = vmatpush1.msra.mxu0 %v222
    %537 = vmatprep.subr.mxu0 0.0
    %538 = vmatpush1.msra.mxu0 %v223
    %539 = vmatprep.subr.mxu0 0.0
    %540 = vmatpush1.msra.mxu0 %v224
    %541 = vmatprep.subr.mxu0 0.0
    %542 = vmatpush1.msra.mxu0 %v225
    %543 = vmatprep.subr.mxu0 0.0
    %544 = vmatpush1.msra.mxu0 %v226
    %545 = vmatprep.subr.mxu0 0.0
    %546 = vmatpush1.msra.mxu0 %v227
    %547 = vmatprep.subr.mxu0 0.0
    %548 = vmatpush1.msra.mxu0 %v228
    %549 = vmatprep.subr.mxu0 0.0
    %550 = vmatpush1.msra.mxu0 %v229
    %551 = vmatprep.subr.mxu0 0.0
    %552 = vmatpush1.msra.mxu0 %v230
    %553 = vmatprep.subr.mxu0 0.0
    %554 = vmatpush1.msra.mxu0 %v231
    %555 = vmatprep.subr.mxu0 0.0
    %556 = vmatpush1.msra.mxu0 %v232
    %557 = vmatprep.subr.mxu0 0.0
    %558 = vmatpush1.msra.mxu0 %v233
    %559 = vmatprep.subr.mxu0 0.0
    %560 = vmatpush1.msra.mxu0 %v234
    %561 = vmatprep.subr.mxu0 0.0
    %562 = vmatpush1.msra.mxu0 %v235
    %563 = vmatprep.subr.mxu0 0.0
    %564 = vmatpush1.msra.mxu0 %v236
    %565 = vmatprep.subr.mxu0 0.0
    %566 = vmatpush1.msra.mxu0 %v237
    %567 = vmatprep.subr.mxu0 0.0
    %568 = vmatpush1.msra.mxu0 %v238
    %569 = vmatprep.subr.mxu0 0.0
    %570 = vmatpush1.msra.mxu0 %v239
    %571 = vmatprep.subr.mxu0 0.0
    %572 = vmatpush1.msra.mxu0 %v240
    %573 = vmatprep.subr.mxu0 0.0
    %574 = vmatpush1.msra.mxu0 %v241
    %575 = vmatprep.subr.mxu0 0.0
    %576 = vmatpush1.msra.mxu0 %v242
    %577 = vmatprep.subr.mxu0 0.0
    %578 = vmatpush1.msra.mxu0 %v243
    %579 = vmatprep.subr.mxu0 0.0
    %580 = vmatpush1.msra.mxu0 %v244
    %581 = vmatprep.subr.mxu0 0.0
    %582 = vmatpush1.msra.mxu0 %v245
    %583 = vmatprep.subr.mxu0 0.0
    %584 = vmatpush1.msra.mxu0 %v246
    %585 = vmatprep.subr.mxu0 0.0
    %586 = vmatpush1.msra.mxu0 %v247
    %587 = vmatprep.subr.mxu0 0.0
    %588 = vmatpush1.msra.mxu0 %v248
    %589 = vmatprep.subr.mxu0 0.0
    %590 = vmatpush1.msra.mxu0 %v249
    %591 = vmatprep.subr.mxu0 0.0
    %592 = vmatpush1.msra.mxu0 %v250
    %593 = vmatprep.subr.mxu0 0.0
    %594 = vmatpush1.msra.mxu0 %v251
    %595 = vmatprep.subr.mxu0 0.0
    %596 = vmatpush1.msra.mxu0 %v252
    %597 = vmatprep.subr.mxu0 0.0
    %598 = vmatpush1.msra.mxu0 %v253
    %599 = vmatprep.mubr.f32.mxu0 %v121
    %600 = vmatmul.mubr.f32.gmra.mrb[0].mxu0 %v120
    %v601 = vpop.f32.mrb[0].mxu0
    %v602 = vadd.f32 %v532, %v601
    %v603 = vpop.f32.mrb[0].mxu0
    %604 = vdwg.mxu0
    %605 = vmatprep.subr.mxu0 0.0
    %606 = vmatpush1.msra.mxu0 %v254
    %607 = vmatprep.subr.mxu0 0.0
    %608 = vmatpush1.msra.mxu0 %v255
    %609 = vmatprep.subr.mxu0 0.0
    %610 = vmatpush1.msra.mxu0 %v256
    %611 = vmatprep.subr.mxu0 0.0
    %612 = vmatpush1.msra.mxu0 %v257
    %613 = vmatprep.subr.mxu0 0.0
    %614 = vmatpush1.msra.mxu0 %v258
    %615 = vmatprep.subr.mxu0 0.0
    %616 = vmatpush1.msra.mxu0 %v259
    %617 = vmatprep.subr.mxu0 0.0
    %618 = vmatpush1.msra.mxu0 %v260
    %619 = vmatprep.subr.mxu0 0.0
    %620 = vmatpush1.msra.mxu0 %v261
    %621 = vmatprep.subr.mxu0 0.0
    %622 = vmatpush1.msra.mxu0 %v262
    %623 = vmatprep.subr.mxu0 0.0
    %624 = vmatpush1.msra.mxu0 %v263
    %625 = vmatprep.subr.mxu0 0.0
    %626 = vmatpush1.msra.mxu0 %v264
    %627 = vmatprep.subr.mxu0 0.0
    %628 = vmatpush1.msra.mxu0 %v265
    %629 = vmatprep.subr.mxu0 0.0
    %630 = vmatpush1.msra.mxu0 %v266
    %631 = vmatprep.subr.mxu0 0.0
    %632 = vmatpush1.msra.mxu0 %v267
    %633 = vmatprep.subr.mxu0 0.0
    %634 = vmatpush1.msra.mxu0 %v268
    %635 = vmatprep.subr.mxu0 0.0
    %636 = vmatpush1.msra.mxu0 %v269
    %637 = vmatprep.subr.mxu0 0.0
    %638 = vmatpush1.msra.mxu0 %v270
    %639 = vmatprep.subr.mxu0 0.0
    %640 = vmatpush1.msra.mxu0 %v271
    %641 = vmatprep.subr.mxu0 0.0
    %642 = vmatpush1.msra.mxu0 %v272
    %643 = vmatprep.subr.mxu0 0.0
    %644 = vmatpush1.msra.mxu0 %v273
    %645 = vmatprep.subr.mxu0 0.0
    %646 = vmatpush1.msra.mxu0 %v274
    %647 = vmatprep.subr.mxu0 0.0
    %648 = vmatpush1.msra.mxu0 %v275
    %649 = vmatprep.subr.mxu0 0.0
    %650 = vmatpush1.msra.mxu0 %v276
    %651 = vmatprep.subr.mxu0 0.0
    %652 = vmatpush1.msra.mxu0 %v277
    %653 = vmatprep.subr.mxu0 0.0
    %654 = vmatpush1.msra.mxu0 %v278
    %655 = vmatprep.subr.mxu0 0.0
    %656 = vmatpush1.msra.mxu0 %v279
    %657 = vmatprep.subr.mxu0 0.0
    %658 = vmatpush1.msra.mxu0 %v280
    %659 = vmatprep.subr.mxu0 0.0
    %660 = vmatpush1.msra.mxu0 %v281
    %661 = vmatprep.subr.mxu0 0.0
    %662 = vmatpush1.msra.mxu0 %v282
    %663 = vmatprep.subr.mxu0 0.0
    %664 = vmatpush1.msra.mxu0 %v283
    %665 = vmatprep.subr.mxu0 0.0
    %666 = vmatpush1.msra.mxu0 %v284
    %667 = vmatprep.subr.mxu0 0.0
    %668 = vmatpush1.msra.mxu0 %v285
    %669 = vmatprep.mubr.f32.mxu0 %v123
    %670 = vmatmul.mubr.f32.gmra.mrb[0].mxu0 %v122
    %v671 = vpop.f32.mrb[0].mxu0
    %v672 = vadd.f32 %v602, %v671
    %v673 = vpop.f32.mrb[0].mxu0
    %674 = vdwg.mxu0
    %675 = vmatprep.subr.mxu0 0.0
    %676 = vmatpush1.msra.mxu0 %v286
    %677 = vmatprep.subr.mxu0 0.0
    %678 = vmatpush1.msra.mxu0 %v287
    %679 = vmatprep.subr.mxu0 0.0
    %680 = vmatpush1.msra.mxu0 %v288
    %681 = vmatprep.subr.mxu0 0.0
    %682 = vmatpush1.msra.mxu0 %v289
    %683 = vmatprep.subr.mxu0 0.0
    %684 = vmatpush1.msra.mxu0 %v290
    %685 = vmatprep.subr.mxu0 0.0
    %686 = vmatpush1.msra.mxu0 %v291
    %687 = vmatprep.subr.mxu0 0.0
    %688 = vmatpush1.msra.mxu0 %v292
    %689 = vmatprep.subr.mxu0 0.0
    %690 = vmatpush1.msra.mxu0 %v293
    %691 = vmatprep.subr.mxu0 0.0
    %692 = vmatpush1.msra.mxu0 %v294
    %693 = vmatprep.subr.mxu0 0.0
    %694 = vmatpush1.msra.mxu0 %v295
    %695 = vmatprep.subr.mxu0 0.0
    %696 = vmatpush1.msra.mxu0 %v296
    %697 = vmatprep.subr.mxu0 0.0
    %698 = vmatpush1.msra.mxu0 %v297
    %699 = vmatprep.subr.mxu0 0.0
    %700 = vmatpush1.msra.mxu0 %v298
    %701 = vmatprep.subr.mxu0 0.0
    %702 = vmatpush1.msra.mxu0 %v299
    %703 = vmatprep.subr.mxu0 0.0
    %704 = vmatpush1.msra.mxu0 %v300
    %705 = vmatprep.subr.mxu0 0.0
    %706 = vmatpush1.msra.mxu0 %v301
    %707 = vmatprep.subr.mxu0 0.0
    %708 = vmatpush1.msra.mxu0 %v302
    %709 = vmatprep.subr.mxu0 0.0
    %710 = vmatpush1.msra.mxu0 %v303
    %711 = vmatprep.subr.mxu0 0.0
    %712 = vmatpush1.msra.mxu0 %v304
    %713 = vmatprep.subr.mxu0 0.0
    %714 = vmatpush1.msra.mxu0 %v305
    %715 = vmatprep.subr.mxu0 0.0
    %716 = vmatpush1.msra.mxu0 %v306
    %717 = vmatprep.subr.mxu0 0.0
    %718 = vmatpush1.msra.mxu0 %v307
    %719 = vmatprep.subr.mxu0 0.0
    %720 = vmatpush1.msra.mxu0 %v308
    %721 = vmatprep.subr.mxu0 0.0
    %722 = vmatpush1.msra.mxu0 %v309
    %723 = vmatprep.subr.mxu0 0.0
    %724 = vmatpush1.msra.mxu0 %v310
    %725 = vmatprep.subr.mxu0 0.0
    %726 = vmatpush1.msra.mxu0 %v311
    %727 = vmatprep.subr.mxu0 0.0
    %728 = vmatpush1.msra.mxu0 %v312
    %729 = vmatprep.subr.mxu0 0.0
    %730 = vmatpush1.msra.mxu0 %v313
    %731 = vmatprep.subr.mxu0 0.0
    %732 = vmatpush1.msra.mxu0 %v314
    %733 = vmatprep.subr.mxu0 0.0
    %734 = vmatpush1.msra.mxu0 %v315
    %735 = vmatprep.subr.mxu0 0.0
    %736 = vmatpush1.msra.mxu0 %v316
    %737 = vmatprep.subr.mxu0 0.0
    %738 = vmatpush1.msra.mxu0 %v317
    %739 = vmatprep.mubr.f32.mxu0 %v125
    %740 = vmatmul.mubr.f32.gmra.mrb[0].mxu0 %v124
    %v741 = vpop.f32.mrb[0].mxu0
    %v742 = vadd.f32 %v672, %v741
    %v743 = vpop.f32.mrb[0].mxu0
    %744 = vdwg.mxu0
    %v745 = vmax.f32 %v742, 0.0
    %v746 = vld [vmem:[#allocation8] sm:$0xff]
    %v747 = vld [vmem:[#allocation8 + $0x8] sm:$0xff]
    %v748 = vld [vmem:[#allocation8 + $0x10] sm:$0xff]
    %v749 = vld [vmem:[#allocation8 + $0x18] sm:$0xff]
    %v750 = vld [vmem:[#allocation8 + $0x20] sm:$0xff]
    %v751 = vld [vmem:[#allocation8 + $0x28] sm:$0xff]
    %v752 = vld [vmem:[#allocation8 + $0x30] sm:$0xff]
    %v753 = vld [vmem:[#allocation8 + $0x38] sm:$0xff]
    %v754 = vld [vmem:[#allocation8 + $0x40] sm:$0xff]
    %v755 = vld [vmem:[#allocation8 + $0x48] sm:$0xff]
    %v756 = vld [vmem:[#allocation8 + $0x50] sm:$0xff]
    %v757 = vld [vmem:[#allocation8 + $0x58] sm:$0xff]
    %v758 = vld [vmem:[#allocation8 + $0x60] sm:$0xff]
    %v759 = vld [vmem:[#allocation8 + $0x68] sm:$0xff]
    %v760 = vld [vmem:[#allocation8 + $0x70] sm:$0xff]
    %v761 = vld [vmem:[#allocation8 + $0x78] sm:$0xff]
    %v762 = vld [vmem:[#allocation10] sm:$0x1]
    %v764 = vlaneseq
    %v765 = vshrl.u32 %v764, 7
    %v766 = vsub.s32 0, %v765
    %v767 = vrot.slane %v762, %v766
    %769 = vmatprep.subr.mxu0 0.0
    %770 = vmatpush1.msra.mxu0 %v746
    %771 = vmatprep.subr.mxu0 0.0
    %772 = vmatpush1.msra.mxu0 %v747
    %773 = vmatprep.subr.mxu0 0.0
    %774 = vmatpush1.msra.mxu0 %v748
    %775 = vmatprep.subr.mxu0 0.0
    %776 = vmatpush1.msra.mxu0 %v749
    %777 = vmatprep.subr.mxu0 0.0
    %778 = vmatpush1.msra.mxu0 %v750
    %779 = vmatprep.subr.mxu0 0.0
    %780 = vmatpush1.msra.mxu0 %v751
    %781 = vmatprep.subr.mxu0 0.0
    %782 = vmatpush1.msra.mxu0 %v752
    %783 = vmatprep.subr.mxu0 0.0
    %784 = vmatpush1.msra.mxu0 %v753
    %785 = vmatprep.subr.mxu0 0.0
    %786 = vmatpush1.msra.mxu0 %v754
    %787 = vmatprep.subr.mxu0 0.0
    %788 = vmatpush1.msra.mxu0 %v755
    %789 = vmatprep.subr.mxu0 0.0
    %790 = vmatpush1.msra.mxu0 %v756
    %791 = vmatprep.subr.mxu0 0.0
    %792 = vmatpush1.msra.mxu0 %v757
    %793 = vmatprep.subr.mxu0 0.0
    %794 = vmatpush1.msra.mxu0 %v758
    %795 = vmatprep.subr.mxu0 0.0
    %796 = vmatpush1.msra.mxu0 %v759
    %797 = vmatprep.subr.mxu0 0.0
    %798 = vmatpush1.msra.mxu0 %v760
    %799 = vmatprep.subr.mxu0 0.0
    %800 = vmatpush1.msra.mxu0 %v761
    %801 = vmatprep.subr.mxu0 0.0
    %802 = vmatpush1.msra.mxu0 0.0
    %803 = vmatprep.subr.mxu0 0.0
    %804 = vmatpush1.msra.mxu0 0.0
    %805 = vmatprep.subr.mxu0 0.0
    %806 = vmatpush1.msra.mxu0 0.0
    %807 = vmatprep.subr.mxu0 0.0
    %808 = vmatpush1.msra.mxu0 0.0
    %809 = vmatprep.subr.mxu0 0.0
    %810 = vmatpush1.msra.mxu0 0.0
    %811 = vmatprep.subr.mxu0 0.0
    %812 = vmatpush1.msra.mxu0 0.0
    %813 = vmatprep.subr.mxu0 0.0
    %814 = vmatpush1.msra.mxu0 0.0
    %815 = vmatprep.subr.mxu0 0.0
    %816 = vmatpush1.msra.mxu0 0.0
    %817 = vmatprep.subr.mxu0 0.0
    %818 = vmatpush1.msra.mxu0 0.0
    %819 = vmatprep.subr.mxu0 0.0
    %820 = vmatpush1.msra.mxu0 0.0
    %821 = vmatprep.subr.mxu0 0.0
    %822 = vmatpush1.msra.mxu0 0.0
    %823 = vmatprep.subr.mxu0 0.0
    %824 = vmatpush1.msra.mxu0 0.0
    %825 = vmatprep.subr.mxu0 0.0
    %826 = vmatpush1.msra.mxu0 0.0
    %827 = vmatprep.subr.mxu0 0.0
    %828 = vmatpush1.msra.mxu0 0.0
    %829 = vmatprep.subr.mxu0 0.0
    %830 = vmatpush1.msra.mxu0 0.0
    %831 = vmatprep.subr.mxu0 0.0
    %832 = vmatpush1.msra.mxu0 0.0
    %833 = vmatprep.mubr.f32.mxu0 0.0
    %834 = vmatmul.mubr.f32.gmra.mrb[0].mxu0 %v745
    %v835 = vpop.f32.mrb[0].mxu0
    %v836 = vadd.f32 %v767, %v835
    %v837 = vpop.f32.mrb[0].mxu0
    %838 = vdwg.mxu0
    %v839 = vmax.f32 %v836, 0.0
    %v840 = vld [vmem:[#allocation11] sm:$0xff]
    %v841 = vld [vmem:[#allocation11 + $0x8] sm:$0xff]
    %v842 = vld [vmem:[#allocation11 + $0x10] sm:$0xff]
    %v843 = vld [vmem:[#allocation11 + $0x18] sm:$0xff]
    %v844 = vld [vmem:[#allocation11 + $0x20] sm:$0xff]
    %v845 = vld [vmem:[#allocation11 + $0x28] sm:$0xff]
    %v846 = vld [vmem:[#allocation11 + $0x30] sm:$0xff]
    %v847 = vld [vmem:[#allocation11 + $0x38] sm:$0xff]
    %v848 = vld [vmem:[#allocation11 + $0x40] sm:$0xff]
    %v849 = vld [vmem:[#allocation11 + $0x48] sm:$0xff]
    %v850 = vld [vmem:[#allocation11 + $0x50] sm:$0xff]
    %v851 = vld [vmem:[#allocation11 + $0x58] sm:$0xff]
    %v852 = vld [vmem:[#allocation11 + $0x60] sm:$0xff]
    %v853 = vld [vmem:[#allocation11 + $0x68] sm:$0xff]
    %v854 = vld [vmem:[#allocation11 + $0x70] sm:$0xff]
    %v855 = vld [vmem:[#allocation11 + $0x78] sm:$0xff]
    %v856 = vld [vmem:[#allocation13] sm:$0x1]
    %v858 = vlaneseq
    %v859 = vshrl.u32 %v858, 7
    %v860 = vsub.s32 0, %v859
    %v861 = vrot.slane %v856, %v860
    %863 = vmatprep.subr.mxu0 0.0
    %864 = vmatpush1.msra.mxu0 %v840
    %865 = vmatprep.subr.mxu0 0.0
    %866 = vmatpush1.msra.mxu0 %v841
    %867 = vmatprep.subr.mxu0 0.0
    %868 = vmatpush1.msra.mxu0 %v842
    %869 = vmatprep.subr.mxu0 0.0
    %870 = vmatpush1.msra.mxu0 %v843
    %871 = vmatprep.subr.mxu0 0.0
    %872 = vmatpush1.msra.mxu0 %v844
    %873 = vmatprep.subr.mxu0 0.0
    %874 = vmatpush1.msra.mxu0 %v845
    %875 = vmatprep.subr.mxu0 0.0
    %876 = vmatpush1.msra.mxu0 %v846
    %877 = vmatprep.subr.mxu0 0.0
    %878 = vmatpush1.msra.mxu0 %v847
    %879 = vmatprep.subr.mxu0 0.0
    %880 = vmatpush1.msra.mxu0 %v848
    %881 = vmatprep.subr.mxu0 0.0
    %882 = vmatpush1.msra.mxu0 %v849
    %883 = vmatprep.subr.mxu0 0.0
    %884 = vmatpush1.msra.mxu0 %v850
    %885 = vmatprep.subr.mxu0 0.0
    %886 = vmatpush1.msra.mxu0 %v851
    %887 = vmatprep.subr.mxu0 0.0
    %888 = vmatpush1.msra.mxu0 %v852
    %889 = vmatprep.subr.mxu0 0.0
    %890 = vmatpush1.msra.mxu0 %v853
    %891 = vmatprep.subr.mxu0 0.0
    %892 = vmatpush1.msra.mxu0 %v854
    %893 = vmatprep.subr.mxu0 0.0
    %894 = vmatpush1.msra.mxu0 %v855
    %895 = vmatprep.subr.mxu0 0.0
    %896 = vmatpush1.msra.mxu0 0.0
    %897 = vmatprep.subr.mxu0 0.0
    %898 = vmatpush1.msra.mxu0 0.0
    %899 = vmatprep.subr.mxu0 0.0
    %900 = vmatpush1.msra.mxu0 0.0
    %901 = vmatprep.subr.mxu0 0.0
    %902 = vmatpush1.msra.mxu0 0.0
    %903 = vmatprep.subr.mxu0 0.0
    %904 = vmatpush1.msra.mxu0 0.0
    %905 = vmatprep.subr.mxu0 0.0
    %906 = vmatpush1.msra.mxu0 0.0
    %907 = vmatprep.subr.mxu0 0.0
    %908 = vmatpush1.msra.mxu0 0.0
    %909 = vmatprep.subr.mxu0 0.0
    %910 = vmatpush1.msra.mxu0 0.0
    %911 = vmatprep.subr.mxu0 0.0
    %912 = vmatpush1.msra.mxu0 0.0
    %913 = vmatprep.subr.mxu0 0.0
    %914 = vmatpush1.msra.mxu0 0.0
    %915 = vmatprep.subr.mxu0 0.0
    %916 = vmatpush1.msra.mxu0 0.0
    %917 = vmatprep.subr.mxu0 0.0
    %918 = vmatpush1.msra.mxu0 0.0
    %919 = vmatprep.subr.mxu0 0.0
    %920 = vmatpush1.msra.mxu0 0.0
    %921 = vmatprep.subr.mxu0 0.0
    %922 = vmatpush1.msra.mxu0 0.0
    %923 = vmatprep.subr.mxu0 0.0
    %924 = vmatpush1.msra.mxu0 0.0
    %925 = vmatprep.subr.mxu0 0.0
    %926 = vmatpush1.msra.mxu0 0.0
    %927 = vmatprep.mubr.f32.mxu0 0.0
    %928 = vmatmul.mubr.f32.gmra.mrb[0].mxu0 %v839
    %v929 = vpop.f32.mrb[0].mxu0
    %v930 = vadd.f32 %v861, %v929
    %v931 = vpop.f32.mrb[0].mxu0
    %932 = vdwg.mxu0
    %933 = vst [vmem:[#allocation14] sm:$0xff] %v930
    // Predicated region
    $region58: #{tpu_custom_call.1} parent=1 // pred_check
      _
    $region59: #{tpu_custom_call.1} parent=1 // pred_check_branch
      %935 = sbr.rel (0) target = $region61
    $region60: #{tpu_custom_call.1} parent=1 // pred_region
      %s937 = ssub.s32 128, 128
      %938 = vsyncadd [#allocation4], %s937
      %s940 = sshll.u32 [#allocation14], 4
      %s941 = int_to_ptr.vmem [resolvable:$true] %s940
      %943 = dma.vmem_to_hbm [thread:$0]  %s941, 128, %s7, [#allocation4]
    $region61: #{tpu_custom_call.1} parent=1 // pred_fallthru
      _
    // Predicated region
    $region62: #{tpu_custom_call.1} parent=1 // pred_check
      _
    $region63: #{tpu_custom_call.1} parent=1 // pred_check_branch
      %945 = sbr.rel (0) target = $region65
    $region64: #{tpu_custom_call.1} parent=1 // pred_region
      %946 = dma.done [#allocation4], 128
    $region65: #{tpu_custom_call.1} parent=1 // pred_fallthru
      _
    %947 = vsyncpa [#allocation3], 1
    %948 = vsyncpa [#allocation6], 1
    %949 = vsyncpa [#allocation9], 1
    %950 = vsyncpa [#allocation12], 1
    %951 = vsyncpa [#allocation4], 1

</llo_original>
